<compile_context>
chip_gen: v7x
topology: tpu7x:2x2x1
jax: 0.10.0
libtpu: 0.0.40
codegen_flags: <defaults>
</compile_context>

<pallas_src>
import jax
import jax.numpy as jnp
from jax.experimental import pallas as pl
from jax.experimental.pallas import tpu as pltpu


def _round_up(a: int, b: int) -> int:
    return ((a + b - 1) // b) * b


def decoder_gru_kernel(xT_ref, wgxu_ref, wgh_ref, wuh_ref, weT_ref, bxu_ref,
                       beT_ref, out_ref, hbuf):
    """One (F, TILE_M) column-tile of the full Decoder_GRU forward.

    Transposed, lane-dense layout: the flattened row axis M = B*N is on lanes.

    xT_ref:   (F, TILE_M)     x^T for this tile (constant over time)
    wgxu_ref: (3F, F)         fused x-side weights [Wg_x ; Wu_x]
    wgh_ref:  (2F, F)         gate Linear h-side weights (r|z fused)
    wuh_ref:  (F, F)          update Linear h-side weights
    weT_ref:  (F, F)          W_edge^T
    bxu_ref:  (3F, 1)         packed [gate_b ; update_b]
    beT_ref:  (F, 1)          b_edge
    out_ref:  (T, F, TILE_M)  y_t^T per step
    hbuf:     (F, T*TILE_M)   VMEM scratch holding every h_t^T
    """
    feat = xT_ref.shape[0]
    tile_m = xT_ref.shape[1]
    n_steps = out_ref.shape[0]

    xT = xT_ref[...]                                           # (F, TILE_M)

    # Hoisted + fused input-side projections (x is constant across steps),
    # biases folded in: one MXU op feeds both the gate and the update Linear.
    ax = jnp.dot(wgxu_ref[...], xT,
                 preferred_element_type=jnp.float32) + bxu_ref[...]   # (3F, TILE_M)
    gx = ax[:2 * feat, :]          # (2F, TILE_M)  gate x-part + gate bias
    cx = ax[2 * feat:, :]          # (F, TILE_M)   update x-part + update bias

    wgh = wgh_ref[...]             # (2F, F)
    wuh = wuh_ref[...]             # (F, F)

    h = jnp.zeros_like(xT)         # hidden_state_edge is None -> zeros

    # Sequential recurrence (serial in t; parallelism lives on the M grid).
    # Only 2 hidden-side MXU ops per step remain on the critical path; h_t is
    # written to the VMEM scratch each step so live ranges stay bounded.
    # TODO(synk): for large seq_target switch this static unroll to
    # lax.fori_loop with a small unroll factor to bound code size.
    for t in range(n_steps):
        gates = gx + jnp.dot(wgh, h, preferred_element_type=jnp.float32)   # (2F, TILE_M)
        r = jax.nn.sigmoid(gates[:feat, :])        # sublane slice (cheap)
        z = jax.nn.sigmoid(gates[feat:, :])
        cy = jnp.tanh(cx + jnp.dot(wuh, r * h, preferred_element_type=jnp.float32))
        h = z * h + (1.0 - z) * cy
        hbuf[:, t * tile_m:(t + 1) * tile_m] = h

    # Epilogue: ONE batched output projection + sigmoid over all T steps
    # (T x more columns amortizes the MXU weight load, and it is off the
    # strictly sequential chain).
    y_all = jax.nn.sigmoid(
        jnp.dot(weT_ref[...], hbuf[...], preferred_element_type=jnp.float32)
        + beT_ref[...])                                        # (F, T*TILE_M)
    for t in range(n_steps):
        out_ref[t] = y_all[:, t * tile_m:(t + 1) * tile_m].astype(out_ref.dtype)


def decoder_gru_forward(inputs_edge, params, seq_target, tile_m=512):
    """Pallas implementation of Decoder_GRU.forward(inputs_edge=...)."""
    b, n, f = inputs_edge.shape
    m = b * n

    # Lane-dense layout: rows (M = B*N) sit on lanes. Pad M to a 128-aligned
    # tile multiple so every tile is full (no tail masking; padded columns are
    # zero -> all ops bounded, and they are sliced off after the call).
    tile_m = min(tile_m, _round_up(m, 128))
    tile_m = _round_up(tile_m, 128)
    m_pad = _round_up(m, tile_m)
    n_tiles = m_pad // tile_m

    x2d = inputs_edge.reshape(m, f).astype(jnp.float32)
    xT = x2d.T                                        # (F, M)   layout plumbing
    if m_pad != m:
        xT = jnp.pad(xT, ((0, 0), (0, m_pad - m)))

    wg, bg = params["gate_w"], params["gate_b"]       # (2F, 2F), (2F,)
    wu, bu = params["update_w"], params["update_b"]   # (F, 2F),  (F,)
    we, be = params["W_edge"], params["b_edge"]       # (F, F),   (F,)

    # PyTorch Linear: y = cat(x, h) @ W.T + b. In the transposed layout:
    #   y^T = W[:, :F] @ x^T + W[:, F:] @ h^T + b[:, None]
    # so the column halves of W are used directly (only tiny params touched).
    f32 = jnp.float32
    wgxu_T = jnp.concatenate([wg[:, :f], wu[:, :f]], axis=0).astype(f32)  # (3F, F)
    wgh_T = wg[:, f:].astype(f32)                                         # (2F, F)
    wuh_T = wu[:, f:].astype(f32)                                         # (F, F)
    weT = we.T.astype(f32)                                                # (F, F)
    bxu = jnp.concatenate([bg, bu]).reshape(3 * f, 1).astype(f32)         # (3F, 1)
    beT = be.reshape(f, 1).astype(f32)                                    # (F, 1)
    # TODO(synk): at production-sized F, cast matmul operands to bf16 (keep
    # f32 accumulation and f32 recurrence state) for ~2x MXU rate on v6e/v7x.

    full = lambda i: (0, 0)      # weights/biases: constant block -> fetched once

    out_t = pl.pallas_call(
        decoder_gru_kernel,
        out_shape=jax.ShapeDtypeStruct((seq_target, f, m_pad), jnp.float32),
        grid_spec=pltpu.PrefetchScalarGridSpec(
            num_scalar_prefetch=0,
            grid=(n_tiles,),
            in_specs=[
                pl.BlockSpec((f, tile_m), lambda i: (0, i)),       # x^T tile
                pl.BlockSpec((3 * f, f), full),                    # [Wg_x ; Wu_x]
                pl.BlockSpec((2 * f, f), full),                    # Wg_h (r|z)
                pl.BlockSpec((f, f), full),                        # Wu_h
                pl.BlockSpec((f, f), full),                        # W_edge^T
                pl.BlockSpec((3 * f, 1), full),                    # [bg ; bu]
                pl.BlockSpec((f, 1), full),                        # b_edge
            ],
            out_specs=pl.BlockSpec((seq_target, f, tile_m), lambda i: (0, 0, i)),
            scratch_shapes=[pltpu.VMEM((f, seq_target * tile_m), jnp.float32)],
        ),
        compiler_params=pltpu.CompilerParams(
            dimension_semantics=("parallel",)),      # M-tiles are independent
    )(xT, wgxu_T, wgh_T, wuh_T, weT, bxu, beT)

    # (T, F, M_pad) -> (T, B, N, F): drop padding, un-transpose (tiny plumbing).
    out = out_t[:, :, :m].transpose(0, 2, 1)
    return out.reshape(seq_target, b, n, f)


def decoder_gru_reference(inputs_edge, params, seq_target):
    """Pure-JAX reference mirroring the PyTorch Decoder_GRU.forward."""
    _, _, f = inputs_edge.shape
    wg, bg = params["gate_w"], params["gate_b"]
    wu, bu = params["update_w"], params["update_b"]
    we, be = params["W_edge"], params["b_edge"]

    x = inputs_edge.astype(jnp.float32)
    h = jnp.zeros_like(x)
    outs = []
    for _ in range(seq_target):
        combined = jnp.concatenate([x, h], axis=-1)
        gates = combined @ wg.T + bg
        r = jax.nn.sigmoid(gates[..., :f])
        z = jax.nn.sigmoid(gates[..., f:])
        cy = jnp.tanh(jnp.concatenate([x, r * h], axis=-1) @ wu.T + bu)
        h = z * h + (1.0 - z) * cy
        outs.append(jax.nn.sigmoid(h @ we + be))
    return jnp.stack(outs, axis=0)                    # (T, B, N, F)


def make_params(key, f):
    """Deterministic synthetic parameters (gate, update, W_edge, b_edge)."""
    ks = jax.random.split(key, 6)
    s1 = 1.0 / jnp.sqrt(jnp.float32(2 * f))
    s2 = 1.0 / jnp.sqrt(jnp.float32(f))
    return {
        "gate_w": jax.random.uniform(ks[0], (2 * f, 2 * f), jnp.float32, -s1, s1),
        "gate_b": jax.random.uniform(ks[1], (2 * f,), jnp.float32, -s1, s1),
        "update_w": jax.random.uniform(ks[2], (f, 2 * f), jnp.float32, -s1, s1),
        "update_b": jax.random.uniform(ks[3], (f,), jnp.float32, -s1, s1),
        "W_edge": jax.random.uniform(ks[4], (f, f), jnp.float32, -s2, s2),
        "b_edge": jax.random.uniform(ks[5], (f,), jnp.float32, -s2, s2),
    }


if __name__ == "__main__":
    # inputs_edge: (batch, num_edge, feature_edge); seq_target decoding steps.
    B, N, F, T = 2, 16, 8, 8

    key = jax.random.PRNGKey(0)
    k_x, k_p = jax.random.split(key)
    inputs_edge = jax.random.normal(k_x, (B, N, F), jnp.float32)
    params = make_params(k_p, F)

    # TODO(synk): inputs_node / hidden_state_node are unused by the PyTorch
    # forward; the inputs_edge-is-None zero-input branch is not plumbed.
    out = decoder_gru_forward(inputs_edge, params, T)
    out = jax.block_until_ready(out)

    ref = decoder_gru_reference(inputs_edge, params, T)
    assert out.shape == (T, B, N, F), out.shape
    assert jnp.allclose(out, ref, atol=2e-5, rtol=2e-5), float(jnp.abs(out - ref).max())

    print("KERNEL_OK")
</pallas_src>

<mosaic_0001>
module attributes {stable_mosaic.version = 11 : i64} {
  func.func @decoder_gru_kernel(%arg0: i32, %arg1: memref<8x128xf32, #tpu.memory_space<vmem>>, %arg2: memref<24x8xf32, #tpu.memory_space<vmem>>, %arg3: memref<16x8xf32, #tpu.memory_space<vmem>>, %arg4: memref<8x8xf32, #tpu.memory_space<vmem>>, %arg5: memref<8x8xf32, #tpu.memory_space<vmem>>, %arg6: memref<24x1xf32, #tpu.memory_space<vmem>>, %arg7: memref<8x1xf32, #tpu.memory_space<vmem>>, %arg8: memref<8x8x128xf32, #tpu.memory_space<vmem>>, %arg9: memref<8x1024xf32, #tpu.memory_space<vmem>>) attributes {dimension_semantics = [#tpu.dimension_semantics<parallel>], iteration_bounds = array<i64: 1>, scalar_prefetch = 0 : i64, scratch_operands = 1 : i64, tpu.core_type = #tpu.core_type<tc>, window_params = [{transform_indices = @transform_0, window_bounds = array<i64: 8, 128>}, {pipeline_mode = #tpu.pipeline_mode<synchronous>, transform_indices = @transform_1, window_bounds = array<i64: 24, 8>}, {pipeline_mode = #tpu.pipeline_mode<synchronous>, transform_indices = @transform_2, window_bounds = array<i64: 16, 8>}, {pipeline_mode = #tpu.pipeline_mode<synchronous>, transform_indices = @transform_3, window_bounds = array<i64: 8, 8>}, {pipeline_mode = #tpu.pipeline_mode<synchronous>, transform_indices = @transform_4, window_bounds = array<i64: 8, 8>}, {pipeline_mode = #tpu.pipeline_mode<synchronous>, transform_indices = @transform_5, window_bounds = array<i64: 24, 1>}, {pipeline_mode = #tpu.pipeline_mode<synchronous>, transform_indices = @transform_6, window_bounds = array<i64: 8, 1>}, {transform_indices = @transform_7, window_bounds = array<i64: 8, 8, 128>}]} {
    %c0 = arith.constant 0 : index
    %c0_0 = arith.constant 0 : index
    %0 = vector.load %arg1[%c0, %c0_0] : memref<8x128xf32, #tpu.memory_space<vmem>>, vector<8x128xf32>
    %c0_1 = arith.constant 0 : index
    %c0_2 = arith.constant 0 : index
    %1 = vector.load %arg2[%c0_1, %c0_2] : memref<24x8xf32, #tpu.memory_space<vmem>>, vector<24x8xf32>
    %cst = arith.constant dense<0.000000e+00> : vector<24x128xf32>
    %2 = tpu.matmul %1, %0, %cst {dimension_numbers = #tpu.dot_dimension_numbers<[1], [0], [0], [1], [0, 0, 1, 1], [], []>} : vector<24x8xf32>, vector<8x128xf32>, vector<24x128xf32> -> vector<24x128xf32>
    %c0_3 = arith.constant 0 : index
    %c0_4 = arith.constant 0 : index
    %3 = vector.load %arg6[%c0_3, %c0_4] : memref<24x1xf32, #tpu.memory_space<vmem>>, vector<24x1xf32>
    %4 = vector.broadcast %3 : vector<24x1xf32> to vector<24x128xf32>
    %5 = arith.addf %2, %4 : vector<24x128xf32>
    %6 = vector.extract_strided_slice %5 {offsets = [0, 0], sizes = [16, 128], strides = [1, 1]} : vector<24x128xf32> to vector<16x128xf32>
    %7 = vector.extract_strided_slice %5 {offsets = [16, 0], sizes = [8, 128], strides = [1, 1]} : vector<24x128xf32> to vector<8x128xf32>
    %c0_5 = arith.constant 0 : index
    %c0_6 = arith.constant 0 : index
    %8 = vector.load %arg3[%c0_5, %c0_6] : memref<16x8xf32, #tpu.memory_space<vmem>>, vector<16x8xf32>
    %c0_7 = arith.constant 0 : index
    %c0_8 = arith.constant 0 : index
    %9 = vector.load %arg4[%c0_7, %c0_8] : memref<8x8xf32, #tpu.memory_space<vmem>>, vector<8x8xf32>
    %cst_9 = arith.constant 0.000000e+00 : f32
    %10 = vector.broadcast %cst_9 : f32 to vector<8x128xf32>
    %cst_10 = arith.constant dense<0.000000e+00> : vector<16x128xf32>
    %11 = tpu.matmul %8, %10, %cst_10 {dimension_numbers = #tpu.dot_dimension_numbers<[1], [0], [0], [1], [0, 0, 1, 1], [], []>} : vector<16x8xf32>, vector<8x128xf32>, vector<16x128xf32> -> vector<16x128xf32>
    %12 = arith.addf %6, %11 : vector<16x128xf32>
    %13 = vector.extract_strided_slice %12 {offsets = [0, 0], sizes = [8, 128], strides = [1, 1]} : vector<16x128xf32> to vector<8x128xf32>
    %14 = arith.negf %13 : vector<8x128xf32>
    %15 = math.exp %14 : vector<8x128xf32>
    %cst_11 = arith.constant 1.000000e+00 : f32
    %16 = vector.broadcast %cst_11 : f32 to vector<8x128xf32>
    %17 = arith.addf %16, %15 : vector<8x128xf32>
    %18 = arith.divf %16, %17 : vector<8x128xf32>
    %19 = vector.extract_strided_slice %12 {offsets = [8, 0], sizes = [8, 128], strides = [1, 1]} : vector<16x128xf32> to vector<8x128xf32>
    %20 = arith.negf %19 : vector<8x128xf32>
    %21 = math.exp %20 : vector<8x128xf32>
    %cst_12 = arith.constant 1.000000e+00 : f32
    %22 = vector.broadcast %cst_12 : f32 to vector<8x128xf32>
    %23 = arith.addf %22, %21 : vector<8x128xf32>
    %24 = arith.divf %22, %23 : vector<8x128xf32>
    %25 = arith.mulf %18, %10 : vector<8x128xf32>
    %cst_13 = arith.constant dense<0.000000e+00> : vector<8x128xf32>
    %26 = tpu.matmul %9, %25, %cst_13 {dimension_numbers = #tpu.dot_dimension_numbers<[1], [0], [0], [1], [0, 0, 1, 1], [], []>} : vector<8x8xf32>, vector<8x128xf32>, vector<8x128xf32> -> vector<8x128xf32>
    %27 = arith.addf %7, %26 : vector<8x128xf32>
    %28 = math.tanh %27 : vector<8x128xf32>
    %29 = arith.mulf %24, %10 : vector<8x128xf32>
    %cst_14 = arith.constant 1.000000e+00 : f32
    %30 = vector.broadcast %cst_14 : f32 to vector<8x128xf32>
    %31 = arith.subf %30, %24 : vector<8x128xf32>
    %32 = arith.mulf %31, %28 : vector<8x128xf32>
    %33 = arith.addf %29, %32 : vector<8x128xf32>
    %c0_15 = arith.constant 0 : index
    %c0_16 = arith.constant 0 : index
    %34 = vector.load %arg9[%c0_15, %c0_16] : memref<8x1024xf32, #tpu.memory_space<vmem>>, vector<8x128xf32>
    tpu.vector_store %arg9[%c0_15, %c0_16], %33 {strides = array<i32>} : memref<8x1024xf32, #tpu.memory_space<vmem>>, vector<8x128xf32>,
    %cst_17 = arith.constant dense<0.000000e+00> : vector<16x128xf32>
    %35 = tpu.matmul %8, %33, %cst_17 {dimension_numbers = #tpu.dot_dimension_numbers<[1], [0], [0], [1], [0, 0, 1, 1], [], []>} : vector<16x8xf32>, vector<8x128xf32>, vector<16x128xf32> -> vector<16x128xf32>
    %36 = arith.addf %6, %35 : vector<16x128xf32>
    %37 = vector.extract_strided_slice %36 {offsets = [0, 0], sizes = [8, 128], strides = [1, 1]} : vector<16x128xf32> to vector<8x128xf32>
    %38 = arith.negf %37 : vector<8x128xf32>
    %39 = math.exp %38 : vector<8x128xf32>
    %cst_18 = arith.constant 1.000000e+00 : f32
    %40 = vector.broadcast %cst_18 : f32 to vector<8x128xf32>
    %41 = arith.addf %40, %39 : vector<8x128xf32>
    %42 = arith.divf %40, %41 : vector<8x128xf32>
    %43 = vector.extract_strided_slice %36 {offsets = [8, 0], sizes = [8, 128], strides = [1, 1]} : vector<16x128xf32> to vector<8x128xf32>
    %44 = arith.negf %43 : vector<8x128xf32>
    %45 = math.exp %44 : vector<8x128xf32>
    %cst_19 = arith.constant 1.000000e+00 : f32
    %46 = vector.broadcast %cst_19 : f32 to vector<8x128xf32>
    %47 = arith.addf %46, %45 : vector<8x128xf32>
    %48 = arith.divf %46, %47 : vector<8x128xf32>
    %49 = arith.mulf %42, %33 : vector<8x128xf32>
    %cst_20 = arith.constant dense<0.000000e+00> : vector<8x128xf32>
    %50 = tpu.matmul %9, %49, %cst_20 {dimension_numbers = #tpu.dot_dimension_numbers<[1], [0], [0], [1], [0, 0, 1, 1], [], []>} : vector<8x8xf32>, vector<8x128xf32>, vector<8x128xf32> -> vector<8x128xf32>
    %51 = arith.addf %7, %50 : vector<8x128xf32>
    %52 = math.tanh %51 : vector<8x128xf32>
    %53 = arith.mulf %48, %33 : vector<8x128xf32>
    %cst_21 = arith.constant 1.000000e+00 : f32
    %54 = vector.broadcast %cst_21 : f32 to vector<8x128xf32>
    %55 = arith.subf %54, %48 : vector<8x128xf32>
    %56 = arith.mulf %55, %52 : vector<8x128xf32>
    %57 = arith.addf %53, %56 : vector<8x128xf32>
    %c0_22 = arith.constant 0 : index
    %c128 = arith.constant 128 : index
    %58 = vector.load %arg9[%c0_22, %c128] : memref<8x1024xf32, #tpu.memory_space<vmem>>, vector<8x128xf32>
    tpu.vector_store %arg9[%c0_22, %c128], %57 {strides = array<i32>} : memref<8x1024xf32, #tpu.memory_space<vmem>>, vector<8x128xf32>,
    %cst_23 = arith.constant dense<0.000000e+00> : vector<16x128xf32>
    %59 = tpu.matmul %8, %57, %cst_23 {dimension_numbers = #tpu.dot_dimension_numbers<[1], [0], [0], [1], [0, 0, 1, 1], [], []>} : vector<16x8xf32>, vector<8x128xf32>, vector<16x128xf32> -> vector<16x128xf32>
    %60 = arith.addf %6, %59 : vector<16x128xf32>
    %61 = vector.extract_strided_slice %60 {offsets = [0, 0], sizes = [8, 128], strides = [1, 1]} : vector<16x128xf32> to vector<8x128xf32>
    %62 = arith.negf %61 : vector<8x128xf32>
    %63 = math.exp %62 : vector<8x128xf32>
    %cst_24 = arith.constant 1.000000e+00 : f32
    %64 = vector.broadcast %cst_24 : f32 to vector<8x128xf32>
    %65 = arith.addf %64, %63 : vector<8x128xf32>
    %66 = arith.divf %64, %65 : vector<8x128xf32>
    %67 = vector.extract_strided_slice %60 {offsets = [8, 0], sizes = [8, 128], strides = [1, 1]} : vector<16x128xf32> to vector<8x128xf32>
    %68 = arith.negf %67 : vector<8x128xf32>
    %69 = math.exp %68 : vector<8x128xf32>
    %cst_25 = arith.constant 1.000000e+00 : f32
    %70 = vector.broadcast %cst_25 : f32 to vector<8x128xf32>
    %71 = arith.addf %70, %69 : vector<8x128xf32>
    %72 = arith.divf %70, %71 : vector<8x128xf32>
    %73 = arith.mulf %66, %57 : vector<8x128xf32>
    %cst_26 = arith.constant dense<0.000000e+00> : vector<8x128xf32>
    %74 = tpu.matmul %9, %73, %cst_26 {dimension_numbers = #tpu.dot_dimension_numbers<[1], [0], [0], [1], [0, 0, 1, 1], [], []>} : vector<8x8xf32>, vector<8x128xf32>, vector<8x128xf32> -> vector<8x128xf32>
    %75 = arith.addf %7, %74 : vector<8x128xf32>
    %76 = math.tanh %75 : vector<8x128xf32>
    %77 = arith.mulf %72, %57 : vector<8x128xf32>
    %cst_27 = arith.constant 1.000000e+00 : f32
    %78 = vector.broadcast %cst_27 : f32 to vector<8x128xf32>
    %79 = arith.subf %78, %72 : vector<8x128xf32>
    %80 = arith.mulf %79, %76 : vector<8x128xf32>
    %81 = arith.addf %77, %80 : vector<8x128xf32>
    %c0_28 = arith.constant 0 : index
    %c256 = arith.constant 256 : index
    %82 = vector.load %arg9[%c0_28, %c256] : memref<8x1024xf32, #tpu.memory_space<vmem>>, vector<8x128xf32>
    tpu.vector_store %arg9[%c0_28, %c256], %81 {strides = array<i32>} : memref<8x1024xf32, #tpu.memory_space<vmem>>, vector<8x128xf32>,
    %cst_29 = arith.constant dense<0.000000e+00> : vector<16x128xf32>
    %83 = tpu.matmul %8, %81, %cst_29 {dimension_numbers = #tpu.dot_dimension_numbers<[1], [0], [0], [1], [0, 0, 1, 1], [], []>} : vector<16x8xf32>, vector<8x128xf32>, vector<16x128xf32> -> vector<16x128xf32>
    %84 = arith.addf %6, %83 : vector<16x128xf32>
    %85 = vector.extract_strided_slice %84 {offsets = [0, 0], sizes = [8, 128], strides = [1, 1]} : vector<16x128xf32> to vector<8x128xf32>
    %86 = arith.negf %85 : vector<8x128xf32>
    %87 = math.exp %86 : vector<8x128xf32>
    %cst_30 = arith.constant 1.000000e+00 : f32
    %88 = vector.broadcast %cst_30 : f32 to vector<8x128xf32>
    %89 = arith.addf %88, %87 : vector<8x128xf32>
    %90 = arith.divf %88, %89 : vector<8x128xf32>
    %91 = vector.extract_strided_slice %84 {offsets = [8, 0], sizes = [8, 128], strides = [1, 1]} : vector<16x128xf32> to vector<8x128xf32>
    %92 = arith.negf %91 : vector<8x128xf32>
    %93 = math.exp %92 : vector<8x128xf32>
    %cst_31 = arith.constant 1.000000e+00 : f32
    %94 = vector.broadcast %cst_31 : f32 to vector<8x128xf32>
    %95 = arith.addf %94, %93 : vector<8x128xf32>
    %96 = arith.divf %94, %95 : vector<8x128xf32>
    %97 = arith.mulf %90, %81 : vector<8x128xf32>
    %cst_32 = arith.constant dense<0.000000e+00> : vector<8x128xf32>
    %98 = tpu.matmul %9, %97, %cst_32 {dimension_numbers = #tpu.dot_dimension_numbers<[1], [0], [0], [1], [0, 0, 1, 1], [], []>} : vector<8x8xf32>, vector<8x128xf32>, vector<8x128xf32> -> vector<8x128xf32>
    %99 = arith.addf %7, %98 : vector<8x128xf32>
    %100 = math.tanh %99 : vector<8x128xf32>
    %101 = arith.mulf %96, %81 : vector<8x128xf32>
    %cst_33 = arith.constant 1.000000e+00 : f32
    %102 = vector.broadcast %cst_33 : f32 to vector<8x128xf32>
    %103 = arith.subf %102, %96 : vector<8x128xf32>
    %104 = arith.mulf %103, %100 : vector<8x128xf32>
    %105 = arith.addf %101, %104 : vector<8x128xf32>
    %c0_34 = arith.constant 0 : index
    %c384 = arith.constant 384 : index
    %106 = vector.load %arg9[%c0_34, %c384] : memref<8x1024xf32, #tpu.memory_space<vmem>>, vector<8x128xf32>
    tpu.vector_store %arg9[%c0_34, %c384], %105 {strides = array<i32>} : memref<8x1024xf32, #tpu.memory_space<vmem>>, vector<8x128xf32>,
    %cst_35 = arith.constant dense<0.000000e+00> : vector<16x128xf32>
    %107 = tpu.matmul %8, %105, %cst_35 {dimension_numbers = #tpu.dot_dimension_numbers<[1], [0], [0], [1], [0, 0, 1, 1], [], []>} : vector<16x8xf32>, vector<8x128xf32>, vector<16x128xf32> -> vector<16x128xf32>
    %108 = arith.addf %6, %107 : vector<16x128xf32>
    %109 = vector.extract_strided_slice %108 {offsets = [0, 0], sizes = [8, 128], strides = [1, 1]} : vector<16x128xf32> to vector<8x128xf32>
    %110 = arith.negf %109 : vector<8x128xf32>
    %111 = math.exp %110 : vector<8x128xf32>
    %cst_36 = arith.constant 1.000000e+00 : f32
    %112 = vector.broadcast %cst_36 : f32 to vector<8x128xf32>
    %113 = arith.addf %112, %111 : vector<8x128xf32>
    %114 = arith.divf %112, %113 : vector<8x128xf32>
    %115 = vector.extract_strided_slice %108 {offsets = [8, 0], sizes = [8, 128], strides = [1, 1]} : vector<16x128xf32> to vector<8x128xf32>
    %116 = arith.negf %115 : vector<8x128xf32>
    %117 = math.exp %116 : vector<8x128xf32>
    %cst_37 = arith.constant 1.000000e+00 : f32
    %118 = vector.broadcast %cst_37 : f32 to vector<8x128xf32>
    %119 = arith.addf %118, %117 : vector<8x128xf32>
    %120 = arith.divf %118, %119 : vector<8x128xf32>
    %121 = arith.mulf %114, %105 : vector<8x128xf32>
    %cst_38 = arith.constant dense<0.000000e+00> : vector<8x128xf32>
    %122 = tpu.matmul %9, %121, %cst_38 {dimension_numbers = #tpu.dot_dimension_numbers<[1], [0], [0], [1], [0, 0, 1, 1], [], []>} : vector<8x8xf32>, vector<8x128xf32>, vector<8x128xf32> -> vector<8x128xf32>
    %123 = arith.addf %7, %122 : vector<8x128xf32>
    %124 = math.tanh %123 : vector<8x128xf32>
    %125 = arith.mulf %120, %105 : vector<8x128xf32>
    %cst_39 = arith.constant 1.000000e+00 : f32
    %126 = vector.broadcast %cst_39 : f32 to vector<8x128xf32>
    %127 = arith.subf %126, %120 : vector<8x128xf32>
    %128 = arith.mulf %127, %124 : vector<8x128xf32>
    %129 = arith.addf %125, %128 : vector<8x128xf32>
    %c0_40 = arith.constant 0 : index
    %c512 = arith.constant 512 : index
    %130 = vector.load %arg9[%c0_40, %c512] : memref<8x1024xf32, #tpu.memory_space<vmem>>, vector<8x128xf32>
    tpu.vector_store %arg9[%c0_40, %c512], %129 {strides = array<i32>} : memref<8x1024xf32, #tpu.memory_space<vmem>>, vector<8x128xf32>,
    %cst_41 = arith.constant dense<0.000000e+00> : vector<16x128xf32>
    %131 = tpu.matmul %8, %129, %cst_41 {dimension_numbers = #tpu.dot_dimension_numbers<[1], [0], [0], [1], [0, 0, 1, 1], [], []>} : vector<16x8xf32>, vector<8x128xf32>, vector<16x128xf32> -> vector<16x128xf32>
    %132 = arith.addf %6, %131 : vector<16x128xf32>
    %133 = vector.extract_strided_slice %132 {offsets = [0, 0], sizes = [8, 128], strides = [1, 1]} : vector<16x128xf32> to vector<8x128xf32>
    %134 = arith.negf %133 : vector<8x128xf32>
    %135 = math.exp %134 : vector<8x128xf32>
    %cst_42 = arith.constant 1.000000e+00 : f32
    %136 = vector.broadcast %cst_42 : f32 to vector<8x128xf32>
    %137 = arith.addf %136, %135 : vector<8x128xf32>
    %138 = arith.divf %136, %137 : vector<8x128xf32>
    %139 = vector.extract_strided_slice %132 {offsets = [8, 0], sizes = [8, 128], strides = [1, 1]} : vector<16x128xf32> to vector<8x128xf32>
    %140 = arith.negf %139 : vector<8x128xf32>
    %141 = math.exp %140 : vector<8x128xf32>
    %cst_43 = arith.constant 1.000000e+00 : f32
    %142 = vector.broadcast %cst_43 : f32 to vector<8x128xf32>
    %143 = arith.addf %142, %141 : vector<8x128xf32>
    %144 = arith.divf %142, %143 : vector<8x128xf32>
    %145 = arith.mulf %138, %129 : vector<8x128xf32>
    %cst_44 = arith.constant dense<0.000000e+00> : vector<8x128xf32>
    %146 = tpu.matmul %9, %145, %cst_44 {dimension_numbers = #tpu.dot_dimension_numbers<[1], [0], [0], [1], [0, 0, 1, 1], [], []>} : vector<8x8xf32>, vector<8x128xf32>, vector<8x128xf32> -> vector<8x128xf32>
    %147 = arith.addf %7, %146 : vector<8x128xf32>
    %148 = math.tanh %147 : vector<8x128xf32>
    %149 = arith.mulf %144, %129 : vector<8x128xf32>
    %cst_45 = arith.constant 1.000000e+00 : f32
    %150 = vector.broadcast %cst_45 : f32 to vector<8x128xf32>
    %151 = arith.subf %150, %144 : vector<8x128xf32>
    %152 = arith.mulf %151, %148 : vector<8x128xf32>
    %153 = arith.addf %149, %152 : vector<8x128xf32>
    %c0_46 = arith.constant 0 : index
    %c640 = arith.constant 640 : index
    %154 = vector.load %arg9[%c0_46, %c640] : memref<8x1024xf32, #tpu.memory_space<vmem>>, vector<8x128xf32>
    tpu.vector_store %arg9[%c0_46, %c640], %153 {strides = array<i32>} : memref<8x1024xf32, #tpu.memory_space<vmem>>, vector<8x128xf32>,
    %cst_47 = arith.constant dense<0.000000e+00> : vector<16x128xf32>
    %155 = tpu.matmul %8, %153, %cst_47 {dimension_numbers = #tpu.dot_dimension_numbers<[1], [0], [0], [1], [0, 0, 1, 1], [], []>} : vector<16x8xf32>, vector<8x128xf32>, vector<16x128xf32> -> vector<16x128xf32>
    %156 = arith.addf %6, %155 : vector<16x128xf32>
    %157 = vector.extract_strided_slice %156 {offsets = [0, 0], sizes = [8, 128], strides = [1, 1]} : vector<16x128xf32> to vector<8x128xf32>
    %158 = arith.negf %157 : vector<8x128xf32>
    %159 = math.exp %158 : vector<8x128xf32>
    %cst_48 = arith.constant 1.000000e+00 : f32
    %160 = vector.broadcast %cst_48 : f32 to vector<8x128xf32>
    %161 = arith.addf %160, %159 : vector<8x128xf32>
    %162 = arith.divf %160, %161 : vector<8x128xf32>
    %163 = vector.extract_strided_slice %156 {offsets = [8, 0], sizes = [8, 128], strides = [1, 1]} : vector<16x128xf32> to vector<8x128xf32>
    %164 = arith.negf %163 : vector<8x128xf32>
    %165 = math.exp %164 : vector<8x128xf32>
    %cst_49 = arith.constant 1.000000e+00 : f32
    %166 = vector.broadcast %cst_49 : f32 to vector<8x128xf32>
    %167 = arith.addf %166, %165 : vector<8x128xf32>
    %168 = arith.divf %166, %167 : vector<8x128xf32>
    %169 = arith.mulf %162, %153 : vector<8x128xf32>
    %cst_50 = arith.constant dense<0.000000e+00> : vector<8x128xf32>
    %170 = tpu.matmul %9, %169, %cst_50 {dimension_numbers = #tpu.dot_dimension_numbers<[1], [0], [0], [1], [0, 0, 1, 1], [], []>} : vector<8x8xf32>, vector<8x128xf32>, vector<8x128xf32> -> vector<8x128xf32>
    %171 = arith.addf %7, %170 : vector<8x128xf32>
    %172 = math.tanh %171 : vector<8x128xf32>
    %173 = arith.mulf %168, %153 : vector<8x128xf32>
    %cst_51 = arith.constant 1.000000e+00 : f32
    %174 = vector.broadcast %cst_51 : f32 to vector<8x128xf32>
    %175 = arith.subf %174, %168 : vector<8x128xf32>
    %176 = arith.mulf %175, %172 : vector<8x128xf32>
    %177 = arith.addf %173, %176 : vector<8x128xf32>
    %c0_52 = arith.constant 0 : index
    %c768 = arith.constant 768 : index
    %178 = vector.load %arg9[%c0_52, %c768] : memref<8x1024xf32, #tpu.memory_space<vmem>>, vector<8x128xf32>
    tpu.vector_store %arg9[%c0_52, %c768], %177 {strides = array<i32>} : memref<8x1024xf32, #tpu.memory_space<vmem>>, vector<8x128xf32>,
    %cst_53 = arith.constant dense<0.000000e+00> : vector<16x128xf32>
    %179 = tpu.matmul %8, %177, %cst_53 {dimension_numbers = #tpu.dot_dimension_numbers<[1], [0], [0], [1], [0, 0, 1, 1], [], []>} : vector<16x8xf32>, vector<8x128xf32>, vector<16x128xf32> -> vector<16x128xf32>
    %180 = arith.addf %6, %179 : vector<16x128xf32>
    %181 = vector.extract_strided_slice %180 {offsets = [0, 0], sizes = [8, 128], strides = [1, 1]} : vector<16x128xf32> to vector<8x128xf32>
    %182 = arith.negf %181 : vector<8x128xf32>
    %183 = math.exp %182 : vector<8x128xf32>
    %cst_54 = arith.constant 1.000000e+00 : f32
    %184 = vector.broadcast %cst_54 : f32 to vector<8x128xf32>
    %185 = arith.addf %184, %183 : vector<8x128xf32>
    %186 = arith.divf %184, %185 : vector<8x128xf32>
    %187 = vector.extract_strided_slice %180 {offsets = [8, 0], sizes = [8, 128], strides = [1, 1]} : vector<16x128xf32> to vector<8x128xf32>
    %188 = arith.negf %187 : vector<8x128xf32>
    %189 = math.exp %188 : vector<8x128xf32>
    %cst_55 = arith.constant 1.000000e+00 : f32
    %190 = vector.broadcast %cst_55 : f32 to vector<8x128xf32>
    %191 = arith.addf %190, %189 : vector<8x128xf32>
    %192 = arith.divf %190, %191 : vector<8x128xf32>
    %193 = arith.mulf %186, %177 : vector<8x128xf32>
    %cst_56 = arith.constant dense<0.000000e+00> : vector<8x128xf32>
    %194 = tpu.matmul %9, %193, %cst_56 {dimension_numbers = #tpu.dot_dimension_numbers<[1], [0], [0], [1], [0, 0, 1, 1], [], []>} : vector<8x8xf32>, vector<8x128xf32>, vector<8x128xf32> -> vector<8x128xf32>
    %195 = arith.addf %7, %194 : vector<8x128xf32>
    %196 = math.tanh %195 : vector<8x128xf32>
    %197 = arith.mulf %192, %177 : vector<8x128xf32>
    %cst_57 = arith.constant 1.000000e+00 : f32
    %198 = vector.broadcast %cst_57 : f32 to vector<8x128xf32>
    %199 = arith.subf %198, %192 : vector<8x128xf32>
    %200 = arith.mulf %199, %196 : vector<8x128xf32>
    %201 = arith.addf %197, %200 : vector<8x128xf32>
    %c0_58 = arith.constant 0 : index
    %c896 = arith.constant 896 : index
    %202 = vector.load %arg9[%c0_58, %c896] : memref<8x1024xf32, #tpu.memory_space<vmem>>, vector<8x128xf32>
    tpu.vector_store %arg9[%c0_58, %c896], %201 {strides = array<i32>} : memref<8x1024xf32, #tpu.memory_space<vmem>>, vector<8x128xf32>,
    %c0_59 = arith.constant 0 : index
    %c0_60 = arith.constant 0 : index
    %203 = vector.load %arg5[%c0_59, %c0_60] : memref<8x8xf32, #tpu.memory_space<vmem>>, vector<8x8xf32>
    %c0_61 = arith.constant 0 : index
    %c0_62 = arith.constant 0 : index
    %204 = vector.load %arg9[%c0_61, %c0_62] : memref<8x1024xf32, #tpu.memory_space<vmem>>, vector<8x1024xf32>
    %cst_63 = arith.constant dense<0.000000e+00> : vector<8x1024xf32>
    %205 = tpu.matmul %203, %204, %cst_63 {dimension_numbers = #tpu.dot_dimension_numbers<[1], [0], [0], [1], [0, 0, 1, 1], [], []>} : vector<8x8xf32>, vector<8x1024xf32>, vector<8x1024xf32> -> vector<8x1024xf32>
    %c0_64 = arith.constant 0 : index
    %c0_65 = arith.constant 0 : index
    %206 = vector.load %arg7[%c0_64, %c0_65] : memref<8x1xf32, #tpu.memory_space<vmem>>, vector<8x1xf32>
    %207 = vector.broadcast %206 : vector<8x1xf32> to vector<8x1024xf32>
    %208 = arith.addf %205, %207 : vector<8x1024xf32>
    %209 = arith.negf %208 : vector<8x1024xf32>
    %210 = math.exp %209 : vector<8x1024xf32>
    %cst_66 = arith.constant 1.000000e+00 : f32
    %211 = vector.broadcast %cst_66 : f32 to vector<8x1024xf32>
    %212 = arith.addf %211, %210 : vector<8x1024xf32>
    %213 = arith.divf %211, %212 : vector<8x1024xf32>
    %214 = vector.extract_strided_slice %213 {offsets = [0, 0], sizes = [8, 128], strides = [1, 1]} : vector<8x1024xf32> to vector<8x128xf32>
    %c0_67 = arith.constant 0 : index
    %c0_68 = arith.constant 0 : index
    %c0_69 = arith.constant 0 : index
    %215 = vector.load %arg8[%c0_67, %c0_68, %c0_69] : memref<8x8x128xf32, #tpu.memory_space<vmem>>, vector<1x8x128xf32>
    %216 = vector.shape_cast %215 : vector<1x8x128xf32> to vector<8x128xf32>
    %217 = vector.shape_cast %214 : vector<8x128xf32> to vector<1x8x128xf32>
    tpu.vector_store %arg8[%c0_67, %c0_68, %c0_69], %217 {strides = array<i32>} : memref<8x8x128xf32, #tpu.memory_space<vmem>>, vector<1x8x128xf32>,
    %218 = vector.extract_strided_slice %213 {offsets = [0, 128], sizes = [8, 128], strides = [1, 1]} : vector<8x1024xf32> to vector<8x128xf32>
    %c1 = arith.constant 1 : index
    %c0_70 = arith.constant 0 : index
    %c0_71 = arith.constant 0 : index
    %219 = vector.load %arg8[%c1, %c0_70, %c0_71] : memref<8x8x128xf32, #tpu.memory_space<vmem>>, vector<1x8x128xf32>
    %220 = vector.shape_cast %219 : vector<1x8x128xf32> to vector<8x128xf32>
    %221 = vector.shape_cast %218 : vector<8x128xf32> to vector<1x8x128xf32>
    tpu.vector_store %arg8[%c1, %c0_70, %c0_71], %221 {strides = array<i32>} : memref<8x8x128xf32, #tpu.memory_space<vmem>>, vector<1x8x128xf32>,
    %222 = vector.extract_strided_slice %213 {offsets = [0, 256], sizes = [8, 128], strides = [1, 1]} : vector<8x1024xf32> to vector<8x128xf32>
    %c2 = arith.constant 2 : index
    %c0_72 = arith.constant 0 : index
    %c0_73 = arith.constant 0 : index
    %223 = vector.load %arg8[%c2, %c0_72, %c0_73] : memref<8x8x128xf32, #tpu.memory_space<vmem>>, vector<1x8x128xf32>
    %224 = vector.shape_cast %223 : vector<1x8x128xf32> to vector<8x128xf32>
    %225 = vector.shape_cast %222 : vector<8x128xf32> to vector<1x8x128xf32>
    tpu.vector_store %arg8[%c2, %c0_72, %c0_73], %225 {strides = array<i32>} : memref<8x8x128xf32, #tpu.memory_space<vmem>>, vector<1x8x128xf32>,
    %226 = vector.extract_strided_slice %213 {offsets = [0, 384], sizes = [8, 128], strides = [1, 1]} : vector<8x1024xf32> to vector<8x128xf32>
    %c3 = arith.constant 3 : index
    %c0_74 = arith.constant 0 : index
    %c0_75 = arith.constant 0 : index
    %227 = vector.load %arg8[%c3, %c0_74, %c0_75] : memref<8x8x128xf32, #tpu.memory_space<vmem>>, vector<1x8x128xf32>
    %228 = vector.shape_cast %227 : vector<1x8x128xf32> to vector<8x128xf32>
    %229 = vector.shape_cast %226 : vector<8x128xf32> to vector<1x8x128xf32>
    tpu.vector_store %arg8[%c3, %c0_74, %c0_75], %229 {strides = array<i32>} : memref<8x8x128xf32, #tpu.memory_space<vmem>>, vector<1x8x128xf32>,
    %230 = vector.extract_strided_slice %213 {offsets = [0, 512], sizes = [8, 128], strides = [1, 1]} : vector<8x1024xf32> to vector<8x128xf32>
    %c4 = arith.constant 4 : index
    %c0_76 = arith.constant 0 : index
    %c0_77 = arith.constant 0 : index
    %231 = vector.load %arg8[%c4, %c0_76, %c0_77] : memref<8x8x128xf32, #tpu.memory_space<vmem>>, vector<1x8x128xf32>
    %232 = vector.shape_cast %231 : vector<1x8x128xf32> to vector<8x128xf32>
    %233 = vector.shape_cast %230 : vector<8x128xf32> to vector<1x8x128xf32>
    tpu.vector_store %arg8[%c4, %c0_76, %c0_77], %233 {strides = array<i32>} : memref<8x8x128xf32, #tpu.memory_space<vmem>>, vector<1x8x128xf32>,
    %234 = vector.extract_strided_slice %213 {offsets = [0, 640], sizes = [8, 128], strides = [1, 1]} : vector<8x1024xf32> to vector<8x128xf32>
    %c5 = arith.constant 5 : index
    %c0_78 = arith.constant 0 : index
    %c0_79 = arith.constant 0 : index
    %235 = vector.load %arg8[%c5, %c0_78, %c0_79] : memref<8x8x128xf32, #tpu.memory_space<vmem>>, vector<1x8x128xf32>
    %236 = vector.shape_cast %235 : vector<1x8x128xf32> to vector<8x128xf32>
    %237 = vector.shape_cast %234 : vector<8x128xf32> to vector<1x8x128xf32>
    tpu.vector_store %arg8[%c5, %c0_78, %c0_79], %237 {strides = array<i32>} : memref<8x8x128xf32, #tpu.memory_space<vmem>>, vector<1x8x128xf32>,
    %238 = vector.extract_strided_slice %213 {offsets = [0, 768], sizes = [8, 128], strides = [1, 1]} : vector<8x1024xf32> to vector<8x128xf32>
    %c6 = arith.constant 6 : index
    %c0_80 = arith.constant 0 : index
    %c0_81 = arith.constant 0 : index
    %239 = vector.load %arg8[%c6, %c0_80, %c0_81] : memref<8x8x128xf32, #tpu.memory_space<vmem>>, vector<1x8x128xf32>
    %240 = vector.shape_cast %239 : vector<1x8x128xf32> to vector<8x128xf32>
    %241 = vector.shape_cast %238 : vector<8x128xf32> to vector<1x8x128xf32>
    tpu.vector_store %arg8[%c6, %c0_80, %c0_81], %241 {strides = array<i32>} : memref<8x8x128xf32, #tpu.memory_space<vmem>>, vector<1x8x128xf32>,
    %242 = vector.extract_strided_slice %213 {offsets = [0, 896], sizes = [8, 128], strides = [1, 1]} : vector<8x1024xf32> to vector<8x128xf32>
    %c7 = arith.constant 7 : index
    %c0_82 = arith.constant 0 : index
    %c0_83 = arith.constant 0 : index
    %243 = vector.load %arg8[%c7, %c0_82, %c0_83] : memref<8x8x128xf32, #tpu.memory_space<vmem>>, vector<1x8x128xf32>
    %244 = vector.shape_cast %243 : vector<1x8x128xf32> to vector<8x128xf32>
    %245 = vector.shape_cast %242 : vector<8x128xf32> to vector<1x8x128xf32>
    tpu.vector_store %arg8[%c7, %c0_82, %c0_83], %245 {strides = array<i32>} : memref<8x8x128xf32, #tpu.memory_space<vmem>>, vector<1x8x128xf32>,
    return
  }
  func.func @transform_0(%arg0: i32) -> (i32, i32) {
    %c0_i32 = arith.constant 0 : i32
    %c0_i32_0 = arith.constant 0 : i32
    return %c0_i32, %arg0 : i32, i32
  }
  func.func @transform_1(%arg0: i32) -> (i32, i32) {
    %c0_i32 = arith.constant 0 : i32
    %c0_i32_0 = arith.constant 0 : i32
    %c0_i32_1 = arith.constant 0 : i32
    return %c0_i32, %c0_i32_0 : i32, i32
  }
  func.func @transform_2(%arg0: i32) -> (i32, i32) {
    %c0_i32 = arith.constant 0 : i32
    %c0_i32_0 = arith.constant 0 : i32
    %c0_i32_1 = arith.constant 0 : i32
    return %c0_i32, %c0_i32_0 : i32, i32
  }
  func.func @transform_3(%arg0: i32) -> (i32, i32) {
    %c0_i32 = arith.constant 0 : i32
    %c0_i32_0 = arith.constant 0 : i32
    %c0_i32_1 = arith.constant 0 : i32
    return %c0_i32, %c0_i32_0 : i32, i32
  }
  func.func @transform_4(%arg0: i32) -> (i32, i32) {
    %c0_i32 = arith.constant 0 : i32
    %c0_i32_0 = arith.constant 0 : i32
    %c0_i32_1 = arith.constant 0 : i32
    return %c0_i32, %c0_i32_0 : i32, i32
  }
  func.func @transform_5(%arg0: i32) -> (i32, i32) {
    %c0_i32 = arith.constant 0 : i32
    %c0_i32_0 = arith.constant 0 : i32
    %c0_i32_1 = arith.constant 0 : i32
    return %c0_i32, %c0_i32_0 : i32, i32
  }
  func.func @transform_6(%arg0: i32) -> (i32, i32) {
    %c0_i32 = arith.constant 0 : i32
    %c0_i32_0 = arith.constant 0 : i32
    %c0_i32_1 = arith.constant 0 : i32
    return %c0_i32, %c0_i32_0 : i32, i32
  }
  func.func @transform_7(%arg0: i32) -> (i32, i32, i32) {
    %c0_i32 = arith.constant 0 : i32
    %c0_i32_0 = arith.constant 0 : i32
    %c0_i32_1 = arith.constant 0 : i32
    return %c0_i32, %c0_i32_0, %arg0 : i32, i32, i32
  }
}

</mosaic_0001>

<llo_original>
// kernel: tpu_custom_call.1
$region0: #{tpu_custom_call.1}
  #allocation0 [shape = 'u32[]', space=smem, size = 0x4, offset = 0x4, fixed_abs, tag = 'smem constant byte address 0x4 - core index']
  #allocation1 [shape = 'u32[144,128]{1,0:T(1,128)}', space=vmem, size = 0x12000, scoped, tag = 'internal scratch']
  #allocation2 [shape = 'f32[8,1024]{1,0:T(8,128)}', space=vmem, size = 0x8000, scoped, tag = 'scratch operand']
  %s0 = inlined_call_operand.vmem [shape: f32[8,128], index: 0, kind: input, shape index: {}]
  %s1 = inlined_call_operand.vmem [shape: f32[24,8], index: 1, kind: input, shape index: {}]
  %s2 = inlined_call_operand.vmem [shape: f32[16,8], index: 2, kind: input, shape index: {}]
  %s3 = inlined_call_operand.vmem [shape: f32[8,8], index: 3, kind: input, shape index: {}]
  %s4 = inlined_call_operand.vmem [shape: f32[8,8], index: 4, kind: input, shape index: {}]
  %s5 = inlined_call_operand.vmem [shape: f32[24,1], index: 5, kind: input, shape index: {}]
  %s6 = inlined_call_operand.vmem [shape: f32[8,1], index: 6, kind: input, shape index: {}]
  %s7 = inlined_call_operand.hbm [shape: f32[8,8,128], index: 7, kind: output, shape index: {}]
  %s8 = sld [smem:[#allocation0]]
  $region38: #{tpu_custom_call.1} parent=0
    _
  %s10 = ssub.s32 1, %s8
  %s11 = scalar_select 0, %s10, %s8
  $region1: #{tpu_custom_call.1} parent=0
    #allocation3 [shape = 'u8[32768]{0}', space=vmem, size = 0x8000, scoped, tag = 'output window, operand 0, single buffered']
    #allocation4 [shape = 's32[1]{0}', space=sflag, size = 0x4, scoped, tag = 'scoped memory for tpu_custom_call.1']
    %12 = vsyncpa [#allocation4], 0
    // Predicated region
    $region2: #{tpu_custom_call.1} parent=1 // pred_check
      _
    $region3: #{tpu_custom_call.1} parent=1 // pred_check_branch
      %14 = sbr.rel (0) target = $region5
    $region4: #{tpu_custom_call.1} parent=1 // pred_region
      _
    $region5: #{tpu_custom_call.1} parent=1 // pred_fallthru
      _
    // Predicated region
    $region6: #{tpu_custom_call.1} parent=1 // pred_check
      _
    $region7: #{tpu_custom_call.1} parent=1 // pred_check_branch
      %16 = sbr.rel (0) target = $region9
    $region8: #{tpu_custom_call.1} parent=1 // pred_region
      _
    $region9: #{tpu_custom_call.1} parent=1 // pred_fallthru
      _
    // Predicated region
    $region10: #{tpu_custom_call.1} parent=1 // pred_check
      _
    $region11: #{tpu_custom_call.1} parent=1 // pred_check_branch
      %18 = sbr.rel (0) target = $region13
    $region12: #{tpu_custom_call.1} parent=1 // pred_region
      _
    $region13: #{tpu_custom_call.1} parent=1 // pred_fallthru
      _
    // Predicated region
    $region14: #{tpu_custom_call.1} parent=1 // pred_check
      _
    $region15: #{tpu_custom_call.1} parent=1 // pred_check_branch
      %20 = sbr.rel (0) target = $region17
    $region16: #{tpu_custom_call.1} parent=1 // pred_region
      _
    $region17: #{tpu_custom_call.1} parent=1 // pred_fallthru
      _
    // Predicated region
    $region18: #{tpu_custom_call.1} parent=1 // pred_check
      _
    $region19: #{tpu_custom_call.1} parent=1 // pred_check_branch
      %22 = sbr.rel (0) target = $region21
    $region20: #{tpu_custom_call.1} parent=1 // pred_region
      _
    $region21: #{tpu_custom_call.1} parent=1 // pred_fallthru
      _
    // Predicated region
    $region22: #{tpu_custom_call.1} parent=1 // pred_check
      _
    $region23: #{tpu_custom_call.1} parent=1 // pred_check_branch
      %24 = sbr.rel (0) target = $region25
    $region24: #{tpu_custom_call.1} parent=1 // pred_region
      _
    $region25: #{tpu_custom_call.1} parent=1 // pred_fallthru
      _
    // Predicated region
    $region26: #{tpu_custom_call.1} parent=1 // pred_check
      _
    $region27: #{tpu_custom_call.1} parent=1 // pred_check_branch
      %26 = sbr.rel (0) target = $region29
    $region28: #{tpu_custom_call.1} parent=1 // pred_region
      _
    $region29: #{tpu_custom_call.1} parent=1 // pred_fallthru
      _
    %v27 = vld [vmem:[%s0] sm:$0xff]
    %v28 = vld [vmem:[%s1] sm:$0xff]
    %v29 = vld [vmem:[%s1 + $0x8] sm:$0xff]
    %v30 = vld [vmem:[%s1 + $0x10] sm:$0xff]
    %v31 = vld [vmem:[%s5] sm:$0xff]
    %v32 = vld [vmem:[%s5 + $0x8] sm:$0xff]
    %v33 = vld [vmem:[%s5 + $0x10] sm:$0xff]
    %35 = vset.pattern.permute.xlu0 0
    %36 = vperm.xlu0 %35, %v31
    %v37 = vpop.permute.xlu0 %36
    %40 = vset.pattern.permute.xlu0 0
    %41 = vperm.xlu0 %40, %v32
    %v42 = vpop.permute.xlu0 %41
    %45 = vset.pattern.permute.xlu0 0
    %46 = vperm.xlu0 %45, %v33
    %v47 = vpop.permute.xlu0 %46
    %vm49 = vcmask 64512
    %v51 = vsel %vm49, %v28, 0
    %v54 = vsel %vm49, %v29, 0
    %v57 = vsel %vm49, %v30, 0
    %59 = vmatprep.subr.mxu0 0.0
    %60 = vmatpush1.msra.mxu0 %v27
    %61 = vmatprep.subr.mxu0 0.0
    %62 = vmatpush1.msra.mxu0 0.0
    %63 = vmatprep.subr.mxu0 0.0
    %64 = vmatpush1.msra.mxu0 0.0
    %65 = vmatprep.subr.mxu0 0.0
    %66 = vmatpush1.msra.mxu0 0.0
    %67 = vmatprep.subr.mxu0 0.0
    %68 = vmatpush1.msra.mxu0 0.0
    %69 = vmatprep.subr.mxu0 0.0
    %70 = vmatpush1.msra.mxu0 0.0
    %71 = vmatprep.subr.mxu0 0.0
    %72 = vmatpush1.msra.mxu0 0.0
    %73 = vmatprep.subr.mxu0 0.0
    %74 = vmatpush1.msra.mxu0 0.0
    %75 = vmatprep.subr.mxu0 0.0
    %76 = vmatpush1.msra.mxu0 0.0
    %77 = vmatprep.subr.mxu0 0.0
    %78 = vmatpush1.msra.mxu0 0.0
    %79 = vmatprep.subr.mxu0 0.0
    %80 = vmatpush1.msra.mxu0 0.0
    %81 = vmatprep.subr.mxu0 0.0
    %82 = vmatpush1.msra.mxu0 0.0
    %83 = vmatprep.subr.mxu0 0.0
    %84 = vmatpush1.msra.mxu0 0.0
    %85 = vmatprep.subr.mxu0 0.0
    %86 = vmatpush1.msra.mxu0 0.0
    %87 = vmatprep.subr.mxu0 0.0
    %88 = vmatpush1.msra.mxu0 0.0
    %89 = vmatprep.subr.mxu0 0.0
    %90 = vmatpush1.msra.mxu0 0.0
    %91 = vmatprep.subr.mxu0 0.0
    %92 = vmatpush1.msra.mxu0 0.0
    %93 = vmatprep.subr.mxu0 0.0
    %94 = vmatpush1.msra.mxu0 0.0
    %95 = vmatprep.subr.mxu0 0.0
    %96 = vmatpush1.msra.mxu0 0.0
    %97 = vmatprep.subr.mxu0 0.0
    %98 = vmatpush1.msra.mxu0 0.0
    %99 = vmatprep.subr.mxu0 0.0
    %100 = vmatpush1.msra.mxu0 0.0
    %101 = vmatprep.subr.mxu0 0.0
    %102 = vmatpush1.msra.mxu0 0.0
    %103 = vmatprep.subr.mxu0 0.0
    %104 = vmatpush1.msra.mxu0 0.0
    %105 = vmatprep.subr.mxu0 0.0
    %106 = vmatpush1.msra.mxu0 0.0
    %107 = vmatprep.subr.mxu0 0.0
    %108 = vmatpush1.msra.mxu0 0.0
    %109 = vmatprep.subr.mxu0 0.0
    %110 = vmatpush1.msra.mxu0 0.0
    %111 = vmatprep.subr.mxu0 0.0
    %112 = vmatpush1.msra.mxu0 0.0
    %113 = vmatprep.subr.mxu0 0.0
    %114 = vmatpush1.msra.mxu0 0.0
    %115 = vmatprep.subr.mxu0 0.0
    %116 = vmatpush1.msra.mxu0 0.0
    %117 = vmatprep.subr.mxu0 0.0
    %118 = vmatpush1.msra.mxu0 0.0
    %119 = vmatprep.subr.mxu0 0.0
    %120 = vmatpush1.msra.mxu0 0.0
    %121 = vmatprep.subr.mxu0 0.0
    %122 = vmatpush1.msra.mxu0 0.0
    %123 = vmatprep.mubr.f32.mxu0 0.0
    %124 = vmatmul.mubr.f32.gmra.mrb[0].mxu0 %v51
    %v125 = vpop.f32.mrb[0].mxu0
    %v126 = vadd.f32 %v37, %v125
    %v127 = vpop.f32.mrb[0].mxu0
    %128 = vmatprep.mubr.f32.mxu0 0.0
    %129 = vmatmul.mubr.f32.gmra.mrb[0].mxu0 %v54
    %v130 = vpop.f32.mrb[0].mxu0
    %v131 = vadd.f32 %v42, %v130
    %v132 = vpop.f32.mrb[0].mxu0
    %133 = vmatprep.mubr.f32.mxu0 0.0
    %134 = vmatmul.mubr.f32.gmra.mrb[0].mxu0 %v57
    %v135 = vpop.f32.mrb[0].mxu0
    %v136 = vadd.f32 %v47, %v135
    %v137 = vpop.f32.mrb[0].mxu0
    %138 = vdwg.mxu0
    %v139 = vld [vmem:[%s2] sm:$0xff]
    %v140 = vld [vmem:[%s2 + $0x8] sm:$0xff]
    %v141 = vld [vmem:[%s3] sm:$0xff]
    %v143 = vsel %vm49, %v139, 0
    %v146 = vsel %vm49, %v140, 0
    %148 = vmatprep.subr.mxu0 0.0
    %149 = vmatpush1.msra.mxu0 0.0
    %150 = vmatprep.subr.mxu0 0.0
    %151 = vmatpush1.msra.mxu0 0.0
    %152 = vmatprep.subr.mxu0 0.0
    %153 = vmatpush1.msra.mxu0 0.0
    %154 = vmatprep.subr.mxu0 0.0
    %155 = vmatpush1.msra.mxu0 0.0
    %156 = vmatprep.subr.mxu0 0.0
    %157 = vmatpush1.msra.mxu0 0.0
    %158 = vmatprep.subr.mxu0 0.0
    %159 = vmatpush1.msra.mxu0 0.0
    %160 = vmatprep.subr.mxu0 0.0
    %161 = vmatpush1.msra.mxu0 0.0
    %162 = vmatprep.subr.mxu0 0.0
    %163 = vmatpush1.msra.mxu0 0.0
    %164 = vmatprep.subr.mxu0 0.0
    %165 = vmatpush1.msra.mxu0 0.0
    %166 = vmatprep.subr.mxu0 0.0
    %167 = vmatpush1.msra.mxu0 0.0
    %168 = vmatprep.subr.mxu0 0.0
    %169 = vmatpush1.msra.mxu0 0.0
    %170 = vmatprep.subr.mxu0 0.0
    %171 = vmatpush1.msra.mxu0 0.0
    %172 = vmatprep.subr.mxu0 0.0
    %173 = vmatpush1.msra.mxu0 0.0
    %174 = vmatprep.subr.mxu0 0.0
    %175 = vmatpush1.msra.mxu0 0.0
    %176 = vmatprep.subr.mxu0 0.0
    %177 = vmatpush1.msra.mxu0 0.0
    %178 = vmatprep.subr.mxu0 0.0
    %179 = vmatpush1.msra.mxu0 0.0
    %180 = vmatprep.subr.mxu0 0.0
    %181 = vmatpush1.msra.mxu0 0.0
    %182 = vmatprep.subr.mxu0 0.0
    %183 = vmatpush1.msra.mxu0 0.0
    %184 = vmatprep.subr.mxu0 0.0
    %185 = vmatpush1.msra.mxu0 0.0
    %186 = vmatprep.subr.mxu0 0.0
    %187 = vmatpush1.msra.mxu0 0.0
    %188 = vmatprep.subr.mxu0 0.0
    %189 = vmatpush1.msra.mxu0 0.0
    %190 = vmatprep.subr.mxu0 0.0
    %191 = vmatpush1.msra.mxu0 0.0
    %192 = vmatprep.subr.mxu0 0.0
    %193 = vmatpush1.msra.mxu0 0.0
    %194 = vmatprep.subr.mxu0 0.0
    %195 = vmatpush1.msra.mxu0 0.0
    %196 = vmatprep.subr.mxu0 0.0
    %197 = vmatpush1.msra.mxu0 0.0
    %198 = vmatprep.subr.mxu0 0.0
    %199 = vmatpush1.msra.mxu0 0.0
    %200 = vmatprep.subr.mxu0 0.0
    %201 = vmatpush1.msra.mxu0 0.0
    %202 = vmatprep.subr.mxu0 0.0
    %203 = vmatpush1.msra.mxu0 0.0
    %204 = vmatprep.subr.mxu0 0.0
    %205 = vmatpush1.msra.mxu0 0.0
    %206 = vmatprep.subr.mxu0 0.0
    %207 = vmatpush1.msra.mxu0 0.0
    %208 = vmatprep.subr.mxu0 0.0
    %209 = vmatpush1.msra.mxu0 0.0
    %210 = vmatprep.subr.mxu0 0.0
    %211 = vmatpush1.msra.mxu0 0.0
    %212 = vmatprep.mubr.f32.mxu0 0.0
    %213 = vmatmul.mubr.f32.gmra.mrb[0].mxu0 %v143
    %v214 = vpop.f32.mrb[0].mxu0
    %v215 = vadd.f32 0.0, %v214
    %v216 = vpop.f32.mrb[0].mxu0
    %217 = vmatprep.mubr.f32.mxu0 0.0
    %218 = vmatmul.mubr.f32.gmra.mrb[0].mxu0 %v146
    %v219 = vpop.f32.mrb[0].mxu0
    %v220 = vadd.f32 0.0, %v219
    %v221 = vpop.f32.mrb[0].mxu0
    %222 = vdwg.mxu0
    %v223 = vadd.f32 %v126, %v215
    %v224 = vadd.f32 %v131, %v220
    %v225 = vxor.u32 %v223, 2147483648
    %v226 = vmul.f32 %v225, 1.442695
    %v227 = vpow.pop %v226
    %v228 = vadd.f32 %v227, 1.0
    %v229 = vrcp.pop %v228
    %v230 = vmul.f32 1.0, %v229
    %v231 = vxor.u32 %v224, 2147483648
    %v232 = vmul.f32 %v231, 1.442695
    %v233 = vpow.pop %v232
    %v234 = vadd.f32 %v233, 1.0
    %v235 = vrcp.pop %v234
    %v236 = vmul.f32 1.0, %v235
    %v237 = vmul.f32 %v230, 0.0
    %v239 = vsel %vm49, %v141, 0
    %241 = vmatprep.subr.mxu0 0.0
    %242 = vmatpush1.msra.mxu0 %v237
    %243 = vmatprep.subr.mxu0 0.0
    %244 = vmatpush1.msra.mxu0 0.0
    %245 = vmatprep.subr.mxu0 0.0
    %246 = vmatpush1.msra.mxu0 0.0
    %247 = vmatprep.subr.mxu0 0.0
    %248 = vmatpush1.msra.mxu0 0.0
    %249 = vmatprep.subr.mxu0 0.0
    %250 = vmatpush1.msra.mxu0 0.0
    %251 = vmatprep.subr.mxu0 0.0
    %252 = vmatpush1.msra.mxu0 0.0
    %253 = vmatprep.subr.mxu0 0.0
    %254 = vmatpush1.msra.mxu0 0.0
    %255 = vmatprep.subr.mxu0 0.0
    %256 = vmatpush1.msra.mxu0 0.0
    %257 = vmatprep.subr.mxu0 0.0
    %258 = vmatpush1.msra.mxu0 0.0
    %259 = vmatprep.subr.mxu0 0.0
    %260 = vmatpush1.msra.mxu0 0.0
    %261 = vmatprep.subr.mxu0 0.0
    %262 = vmatpush1.msra.mxu0 0.0
    %263 = vmatprep.subr.mxu0 0.0
    %264 = vmatpush1.msra.mxu0 0.0
    %265 = vmatprep.subr.mxu0 0.0
    %266 = vmatpush1.msra.mxu0 0.0
    %267 = vmatprep.subr.mxu0 0.0
    %268 = vmatpush1.msra.mxu0 0.0
    %269 = vmatprep.subr.mxu0 0.0
    %270 = vmatpush1.msra.mxu0 0.0
    %271 = vmatprep.subr.mxu0 0.0
    %272 = vmatpush1.msra.mxu0 0.0
    %273 = vmatprep.subr.mxu0 0.0
    %274 = vmatpush1.msra.mxu0 0.0
    %275 = vmatprep.subr.mxu0 0.0
    %276 = vmatpush1.msra.mxu0 0.0
    %277 = vmatprep.subr.mxu0 0.0
    %278 = vmatpush1.msra.mxu0 0.0
    %279 = vmatprep.subr.mxu0 0.0
    %280 = vmatpush1.msra.mxu0 0.0
    %281 = vmatprep.subr.mxu0 0.0
    %282 = vmatpush1.msra.mxu0 0.0
    %283 = vmatprep.subr.mxu0 0.0
    %284 = vmatpush1.msra.mxu0 0.0
    %285 = vmatprep.subr.mxu0 0.0
    %286 = vmatpush1.msra.mxu0 0.0
    %287 = vmatprep.subr.mxu0 0.0
    %288 = vmatpush1.msra.mxu0 0.0
    %289 = vmatprep.subr.mxu0 0.0
    %290 = vmatpush1.msra.mxu0 0.0
    %291 = vmatprep.subr.mxu0 0.0
    %292 = vmatpush1.msra.mxu0 0.0
    %293 = vmatprep.subr.mxu0 0.0
    %294 = vmatpush1.msra.mxu0 0.0
    %295 = vmatprep.subr.mxu0 0.0
    %296 = vmatpush1.msra.mxu0 0.0
    %297 = vmatprep.subr.mxu0 0.0
    %298 = vmatpush1.msra.mxu0 0.0
    %299 = vmatprep.subr.mxu0 0.0
    %300 = vmatpush1.msra.mxu0 0.0
    %301 = vmatprep.subr.mxu0 0.0
    %302 = vmatpush1.msra.mxu0 0.0
    %303 = vmatprep.subr.mxu0 0.0
    %304 = vmatpush1.msra.mxu0 0.0
    %305 = vmatprep.mubr.f32.mxu0 0.0
    %306 = vmatmul.mubr.f32.gmra.mrb[0].mxu0 %v239
    %v307 = vpop.f32.mrb[0].mxu0
    %v308 = vadd.f32 0.0, %v307
    %v309 = vpop.f32.mrb[0].mxu0
    %310 = vdwg.mxu0
    %v311 = vadd.f32 %v136, %v308
    %v312 = vtanh.pop %v311
    %v313 = vmul.f32 %v236, 0.0
    %v314 = vsub.f32 1.0, %v236
    %v315 = vmul.f32 %v314, %v312
    %v316 = vadd.f32 %v313, %v315
    %317 = vst [vmem:[#allocation2] sm:$0xff] %v316
    %318 = vmatprep.subr.mxu0 0.0
    %319 = vmatpush1.msra.mxu0 %v316
    %320 = vmatprep.subr.mxu0 0.0
    %321 = vmatpush1.msra.mxu0 0.0
    %322 = vmatprep.subr.mxu0 0.0
    %323 = vmatpush1.msra.mxu0 0.0
    %324 = vmatprep.subr.mxu0 0.0
    %325 = vmatpush1.msra.mxu0 0.0
    %326 = vmatprep.subr.mxu0 0.0
    %327 = vmatpush1.msra.mxu0 0.0
    %328 = vmatprep.subr.mxu0 0.0
    %329 = vmatpush1.msra.mxu0 0.0
    %330 = vmatprep.subr.mxu0 0.0
    %331 = vmatpush1.msra.mxu0 0.0
    %332 = vmatprep.subr.mxu0 0.0
    %333 = vmatpush1.msra.mxu0 0.0
    %334 = vmatprep.subr.mxu0 0.0
    %335 = vmatpush1.msra.mxu0 0.0
    %336 = vmatprep.subr.mxu0 0.0
    %337 = vmatpush1.msra.mxu0 0.0
    %338 = vmatprep.subr.mxu0 0.0
    %339 = vmatpush1.msra.mxu0 0.0
    %340 = vmatprep.subr.mxu0 0.0
    %341 = vmatpush1.msra.mxu0 0.0
    %342 = vmatprep.subr.mxu0 0.0
    %343 = vmatpush1.msra.mxu0 0.0
    %344 = vmatprep.subr.mxu0 0.0
    %345 = vmatpush1.msra.mxu0 0.0
    %346 = vmatprep.subr.mxu0 0.0
    %347 = vmatpush1.msra.mxu0 0.0
    %348 = vmatprep.subr.mxu0 0.0
    %349 = vmatpush1.msra.mxu0 0.0
    %350 = vmatprep.subr.mxu0 0.0
    %351 = vmatpush1.msra.mxu0 0.0
    %352 = vmatprep.subr.mxu0 0.0
    %353 = vmatpush1.msra.mxu0 0.0
    %354 = vmatprep.subr.mxu0 0.0
    %355 = vmatpush1.msra.mxu0 0.0
    %356 = vmatprep.subr.mxu0 0.0
    %357 = vmatpush1.msra.mxu0 0.0
    %358 = vmatprep.subr.mxu0 0.0
    %359 = vmatpush1.msra.mxu0 0.0
    %360 = vmatprep.subr.mxu0 0.0
    %361 = vmatpush1.msra.mxu0 0.0
    %362 = vmatprep.subr.mxu0 0.0
    %363 = vmatpush1.msra.mxu0 0.0
    %364 = vmatprep.subr.mxu0 0.0
    %365 = vmatpush1.msra.mxu0 0.0
    %366 = vmatprep.subr.mxu0 0.0
    %367 = vmatpush1.msra.mxu0 0.0
    %368 = vmatprep.subr.mxu0 0.0
    %369 = vmatpush1.msra.mxu0 0.0
    %370 = vmatprep.subr.mxu0 0.0
    %371 = vmatpush1.msra.mxu0 0.0
    %372 = vmatprep.subr.mxu0 0.0
    %373 = vmatpush1.msra.mxu0 0.0
    %374 = vmatprep.subr.mxu0 0.0
    %375 = vmatpush1.msra.mxu0 0.0
    %376 = vmatprep.subr.mxu0 0.0
    %377 = vmatpush1.msra.mxu0 0.0
    %378 = vmatprep.subr.mxu0 0.0
    %379 = vmatpush1.msra.mxu0 0.0
    %380 = vmatprep.subr.mxu0 0.0
    %381 = vmatpush1.msra.mxu0 0.0
    %382 = vmatprep.mubr.f32.mxu0 0.0
    %383 = vmatmul.mubr.f32.gmra.mrb[0].mxu0 %v143
    %v384 = vpop.f32.mrb[0].mxu0
    %v385 = vadd.f32 0.0, %v384
    %v386 = vpop.f32.mrb[0].mxu0
    %387 = vmatprep.mubr.f32.mxu0 0.0
    %388 = vmatmul.mubr.f32.gmra.mrb[0].mxu0 %v146
    %v389 = vpop.f32.mrb[0].mxu0
    %v390 = vadd.f32 0.0, %v389
    %v391 = vpop.f32.mrb[0].mxu0
    %392 = vdwg.mxu0
    %v393 = vadd.f32 %v126, %v385
    %v394 = vadd.f32 %v131, %v390
    %v395 = vxor.u32 %v393, 2147483648
    %v396 = vmul.f32 %v395, 1.442695
    %v397 = vpow.pop %v396
    %v398 = vadd.f32 %v397, 1.0
    %v399 = vrcp.pop %v398
    %v400 = vmul.f32 1.0, %v399
    %v401 = vxor.u32 %v394, 2147483648
    %v402 = vmul.f32 %v401, 1.442695
    %v403 = vpow.pop %v402
    %v404 = vadd.f32 %v403, 1.0
    %v405 = vrcp.pop %v404
    %v406 = vmul.f32 1.0, %v405
    %v407 = vmul.f32 %v400, %v316
    %408 = vmatprep.subr.mxu0 0.0
    %409 = vmatpush1.msra.mxu0 %v407
    %410 = vmatprep.subr.mxu0 0.0
    %411 = vmatpush1.msra.mxu0 0.0
    %412 = vmatprep.subr.mxu0 0.0
    %413 = vmatpush1.msra.mxu0 0.0
    %414 = vmatprep.subr.mxu0 0.0
    %415 = vmatpush1.msra.mxu0 0.0
    %416 = vmatprep.subr.mxu0 0.0
    %417 = vmatpush1.msra.mxu0 0.0
    %418 = vmatprep.subr.mxu0 0.0
    %419 = vmatpush1.msra.mxu0 0.0
    %420 = vmatprep.subr.mxu0 0.0
    %421 = vmatpush1.msra.mxu0 0.0
    %422 = vmatprep.subr.mxu0 0.0
    %423 = vmatpush1.msra.mxu0 0.0
    %424 = vmatprep.subr.mxu0 0.0
    %425 = vmatpush1.msra.mxu0 0.0
    %426 = vmatprep.subr.mxu0 0.0
    %427 = vmatpush1.msra.mxu0 0.0
    %428 = vmatprep.subr.mxu0 0.0
    %429 = vmatpush1.msra.mxu0 0.0
    %430 = vmatprep.subr.mxu0 0.0
    %431 = vmatpush1.msra.mxu0 0.0
    %432 = vmatprep.subr.mxu0 0.0
    %433 = vmatpush1.msra.mxu0 0.0
    %434 = vmatprep.subr.mxu0 0.0
    %435 = vmatpush1.msra.mxu0 0.0
    %436 = vmatprep.subr.mxu0 0.0
    %437 = vmatpush1.msra.mxu0 0.0
    %438 = vmatprep.subr.mxu0 0.0
    %439 = vmatpush1.msra.mxu0 0.0
    %440 = vmatprep.subr.mxu0 0.0
    %441 = vmatpush1.msra.mxu0 0.0
    %442 = vmatprep.subr.mxu0 0.0
    %443 = vmatpush1.msra.mxu0 0.0
    %444 = vmatprep.subr.mxu0 0.0
    %445 = vmatpush1.msra.mxu0 0.0
    %446 = vmatprep.subr.mxu0 0.0
    %447 = vmatpush1.msra.mxu0 0.0
    %448 = vmatprep.subr.mxu0 0.0
    %449 = vmatpush1.msra.mxu0 0.0
    %450 = vmatprep.subr.mxu0 0.0
    %451 = vmatpush1.msra.mxu0 0.0
    %452 = vmatprep.subr.mxu0 0.0
    %453 = vmatpush1.msra.mxu0 0.0
    %454 = vmatprep.subr.mxu0 0.0
    %455 = vmatpush1.msra.mxu0 0.0
    %456 = vmatprep.subr.mxu0 0.0
    %457 = vmatpush1.msra.mxu0 0.0
    %458 = vmatprep.subr.mxu0 0.0
    %459 = vmatpush1.msra.mxu0 0.0
    %460 = vmatprep.subr.mxu0 0.0
    %461 = vmatpush1.msra.mxu0 0.0
    %462 = vmatprep.subr.mxu0 0.0
    %463 = vmatpush1.msra.mxu0 0.0
    %464 = vmatprep.subr.mxu0 0.0
    %465 = vmatpush1.msra.mxu0 0.0
    %466 = vmatprep.subr.mxu0 0.0
    %467 = vmatpush1.msra.mxu0 0.0
    %468 = vmatprep.subr.mxu0 0.0
    %469 = vmatpush1.msra.mxu0 0.0
    %470 = vmatprep.subr.mxu0 0.0
    %471 = vmatpush1.msra.mxu0 0.0
    %472 = vmatprep.mubr.f32.mxu0 0.0
    %473 = vmatmul.mubr.f32.gmra.mrb[0].mxu0 %v239
    %v474 = vpop.f32.mrb[0].mxu0
    %v475 = vadd.f32 0.0, %v474
    %v476 = vpop.f32.mrb[0].mxu0
    %477 = vdwg.mxu0
    %v478 = vadd.f32 %v136, %v475
    %v479 = vtanh.pop %v478
    %v480 = vmul.f32 %v406, %v316
    %v481 = vsub.f32 1.0, %v406
    %v482 = vmul.f32 %v481, %v479
    %v483 = vadd.f32 %v480, %v482
    %484 = vst [vmem:[#allocation2 + $0x8] sm:$0xff] %v483
    %485 = vmatprep.subr.mxu0 0.0
    %486 = vmatpush1.msra.mxu0 %v483
    %487 = vmatprep.subr.mxu0 0.0
    %488 = vmatpush1.msra.mxu0 0.0
    %489 = vmatprep.subr.mxu0 0.0
    %490 = vmatpush1.msra.mxu0 0.0
    %491 = vmatprep.subr.mxu0 0.0
    %492 = vmatpush1.msra.mxu0 0.0
    %493 = vmatprep.subr.mxu0 0.0
    %494 = vmatpush1.msra.mxu0 0.0
    %495 = vmatprep.subr.mxu0 0.0
    %496 = vmatpush1.msra.mxu0 0.0
    %497 = vmatprep.subr.mxu0 0.0
    %498 = vmatpush1.msra.mxu0 0.0
    %499 = vmatprep.subr.mxu0 0.0
    %500 = vmatpush1.msra.mxu0 0.0
    %501 = vmatprep.subr.mxu0 0.0
    %502 = vmatpush1.msra.mxu0 0.0
    %503 = vmatprep.subr.mxu0 0.0
    %504 = vmatpush1.msra.mxu0 0.0
    %505 = vmatprep.subr.mxu0 0.0
    %506 = vmatpush1.msra.mxu0 0.0
    %507 = vmatprep.subr.mxu0 0.0
    %508 = vmatpush1.msra.mxu0 0.0
    %509 = vmatprep.subr.mxu0 0.0
    %510 = vmatpush1.msra.mxu0 0.0
    %511 = vmatprep.subr.mxu0 0.0
    %512 = vmatpush1.msra.mxu0 0.0
    %513 = vmatprep.subr.mxu0 0.0
    %514 = vmatpush1.msra.mxu0 0.0
    %515 = vmatprep.subr.mxu0 0.0
    %516 = vmatpush1.msra.mxu0 0.0
    %517 = vmatprep.subr.mxu0 0.0
    %518 = vmatpush1.msra.mxu0 0.0
    %519 = vmatprep.subr.mxu0 0.0
    %520 = vmatpush1.msra.mxu0 0.0
    %521 = vmatprep.subr.mxu0 0.0
    %522 = vmatpush1.msra.mxu0 0.0
    %523 = vmatprep.subr.mxu0 0.0
    %524 = vmatpush1.msra.mxu0 0.0
    %525 = vmatprep.subr.mxu0 0.0
    %526 = vmatpush1.msra.mxu0 0.0
    %527 = vmatprep.subr.mxu0 0.0
    %528 = vmatpush1.msra.mxu0 0.0
    %529 = vmatprep.subr.mxu0 0.0
    %530 = vmatpush1.msra.mxu0 0.0
    %531 = vmatprep.subr.mxu0 0.0
    %532 = vmatpush1.msra.mxu0 0.0
    %533 = vmatprep.subr.mxu0 0.0
    %534 = vmatpush1.msra.mxu0 0.0
    %535 = vmatprep.subr.mxu0 0.0
    %536 = vmatpush1.msra.mxu0 0.0
    %537 = vmatprep.subr.mxu0 0.0
    %538 = vmatpush1.msra.mxu0 0.0
    %539 = vmatprep.subr.mxu0 0.0
    %540 = vmatpush1.msra.mxu0 0.0
    %541 = vmatprep.subr.mxu0 0.0
    %542 = vmatpush1.msra.mxu0 0.0
    %543 = vmatprep.subr.mxu0 0.0
    %544 = vmatpush1.msra.mxu0 0.0
    %545 = vmatprep.subr.mxu0 0.0
    %546 = vmatpush1.msra.mxu0 0.0
    %547 = vmatprep.subr.mxu0 0.0
    %548 = vmatpush1.msra.mxu0 0.0
    %549 = vmatprep.mubr.f32.mxu0 0.0
    %550 = vmatmul.mubr.f32.gmra.mrb[0].mxu0 %v143
    %v551 = vpop.f32.mrb[0].mxu0
    %v552 = vadd.f32 0.0, %v551
    %v553 = vpop.f32.mrb[0].mxu0
    %554 = vmatprep.mubr.f32.mxu0 0.0
    %555 = vmatmul.mubr.f32.gmra.mrb[0].mxu0 %v146
    %v556 = vpop.f32.mrb[0].mxu0
    %v557 = vadd.f32 0.0, %v556
    %v558 = vpop.f32.mrb[0].mxu0
    %559 = vdwg.mxu0
    %v560 = vadd.f32 %v126, %v552
    %v561 = vadd.f32 %v131, %v557
    %v562 = vxor.u32 %v560, 2147483648
    %v563 = vmul.f32 %v562, 1.442695
    %v564 = vpow.pop %v563
    %v565 = vadd.f32 %v564, 1.0
    %v566 = vrcp.pop %v565
    %v567 = vmul.f32 1.0, %v566
    %v568 = vxor.u32 %v561, 2147483648
    %v569 = vmul.f32 %v568, 1.442695
    %v570 = vpow.pop %v569
    %v571 = vadd.f32 %v570, 1.0
    %v572 = vrcp.pop %v571
    %v573 = vmul.f32 1.0, %v572
    %v574 = vmul.f32 %v567, %v483
    %575 = vmatprep.subr.mxu0 0.0
    %576 = vmatpush1.msra.mxu0 %v574
    %577 = vmatprep.subr.mxu0 0.0
    %578 = vmatpush1.msra.mxu0 0.0
    %579 = vmatprep.subr.mxu0 0.0
    %580 = vmatpush1.msra.mxu0 0.0
    %581 = vmatprep.subr.mxu0 0.0
    %582 = vmatpush1.msra.mxu0 0.0
    %583 = vmatprep.subr.mxu0 0.0
    %584 = vmatpush1.msra.mxu0 0.0
    %585 = vmatprep.subr.mxu0 0.0
    %586 = vmatpush1.msra.mxu0 0.0
    %587 = vmatprep.subr.mxu0 0.0
    %588 = vmatpush1.msra.mxu0 0.0
    %589 = vmatprep.subr.mxu0 0.0
    %590 = vmatpush1.msra.mxu0 0.0
    %591 = vmatprep.subr.mxu0 0.0
    %592 = vmatpush1.msra.mxu0 0.0
    %593 = vmatprep.subr.mxu0 0.0
    %594 = vmatpush1.msra.mxu0 0.0
    %595 = vmatprep.subr.mxu0 0.0
    %596 = vmatpush1.msra.mxu0 0.0
    %597 = vmatprep.subr.mxu0 0.0
    %598 = vmatpush1.msra.mxu0 0.0
    %599 = vmatprep.subr.mxu0 0.0
    %600 = vmatpush1.msra.mxu0 0.0
    %601 = vmatprep.subr.mxu0 0.0
    %602 = vmatpush1.msra.mxu0 0.0
    %603 = vmatprep.subr.mxu0 0.0
    %604 = vmatpush1.msra.mxu0 0.0
    %605 = vmatprep.subr.mxu0 0.0
    %606 = vmatpush1.msra.mxu0 0.0
    %607 = vmatprep.subr.mxu0 0.0
    %608 = vmatpush1.msra.mxu0 0.0
    %609 = vmatprep.subr.mxu0 0.0
    %610 = vmatpush1.msra.mxu0 0.0
    %611 = vmatprep.subr.mxu0 0.0
    %612 = vmatpush1.msra.mxu0 0.0
    %613 = vmatprep.subr.mxu0 0.0
    %614 = vmatpush1.msra.mxu0 0.0
    %615 = vmatprep.subr.mxu0 0.0
    %616 = vmatpush1.msra.mxu0 0.0
    %617 = vmatprep.subr.mxu0 0.0
    %618 = vmatpush1.msra.mxu0 0.0
    %619 = vmatprep.subr.mxu0 0.0
    %620 = vmatpush1.msra.mxu0 0.0
    %621 = vmatprep.subr.mxu0 0.0
    %622 = vmatpush1.msra.mxu0 0.0
    %623 = vmatprep.subr.mxu0 0.0
    %624 = vmatpush1.msra.mxu0 0.0
    %625 = vmatprep.subr.mxu0 0.0
    %626 = vmatpush1.msra.mxu0 0.0
    %627 = vmatprep.subr.mxu0 0.0
    %628 = vmatpush1.msra.mxu0 0.0
    %629 = vmatprep.subr.mxu0 0.0
    %630 = vmatpush1.msra.mxu0 0.0
    %631 = vmatprep.subr.mxu0 0.0
    %632 = vmatpush1.msra.mxu0 0.0
    %633 = vmatprep.subr.mxu0 0.0
    %634 = vmatpush1.msra.mxu0 0.0
    %635 = vmatprep.subr.mxu0 0.0
    %636 = vmatpush1.msra.mxu0 0.0
    %637 = vmatprep.subr.mxu0 0.0
    %638 = vmatpush1.msra.mxu0 0.0
    %639 = vmatprep.mubr.f32.mxu0 0.0
    %640 = vmatmul.mubr.f32.gmra.mrb[0].mxu0 %v239
    %v641 = vpop.f32.mrb[0].mxu0
    %v642 = vadd.f32 0.0, %v641
    %v643 = vpop.f32.mrb[0].mxu0
    %644 = vdwg.mxu0
    %v645 = vadd.f32 %v136, %v642
    %v646 = vtanh.pop %v645
    %v647 = vmul.f32 %v573, %v483
    %v648 = vsub.f32 1.0, %v573
    %v649 = vmul.f32 %v648, %v646
    %v650 = vadd.f32 %v647, %v649
    %651 = vst [vmem:[#allocation2 + $0x10] sm:$0xff] %v650
    %652 = vmatprep.subr.mxu0 0.0
    %653 = vmatpush1.msra.mxu0 %v650
    %654 = vmatprep.subr.mxu0 0.0
    %655 = vmatpush1.msra.mxu0 0.0
    %656 = vmatprep.subr.mxu0 0.0
    %657 = vmatpush1.msra.mxu0 0.0
    %658 = vmatprep.subr.mxu0 0.0
    %659 = vmatpush1.msra.mxu0 0.0
    %660 = vmatprep.subr.mxu0 0.0
    %661 = vmatpush1.msra.mxu0 0.0
    %662 = vmatprep.subr.mxu0 0.0
    %663 = vmatpush1.msra.mxu0 0.0
    %664 = vmatprep.subr.mxu0 0.0
    %665 = vmatpush1.msra.mxu0 0.0
    %666 = vmatprep.subr.mxu0 0.0
    %667 = vmatpush1.msra.mxu0 0.0
    %668 = vmatprep.subr.mxu0 0.0
    %669 = vmatpush1.msra.mxu0 0.0
    %670 = vmatprep.subr.mxu0 0.0
    %671 = vmatpush1.msra.mxu0 0.0
    %672 = vmatprep.subr.mxu0 0.0
    %673 = vmatpush1.msra.mxu0 0.0
    %674 = vmatprep.subr.mxu0 0.0
    %675 = vmatpush1.msra.mxu0 0.0
    %676 = vmatprep.subr.mxu0 0.0
    %677 = vmatpush1.msra.mxu0 0.0
    %678 = vmatprep.subr.mxu0 0.0
    %679 = vmatpush1.msra.mxu0 0.0
    %680 = vmatprep.subr.mxu0 0.0
    %681 = vmatpush1.msra.mxu0 0.0
    %682 = vmatprep.subr.mxu0 0.0
    %683 = vmatpush1.msra.mxu0 0.0
    %684 = vmatprep.subr.mxu0 0.0
    %685 = vmatpush1.msra.mxu0 0.0
    %686 = vmatprep.subr.mxu0 0.0
    %687 = vmatpush1.msra.mxu0 0.0
    %688 = vmatprep.subr.mxu0 0.0
    %689 = vmatpush1.msra.mxu0 0.0
    %690 = vmatprep.subr.mxu0 0.0
    %691 = vmatpush1.msra.mxu0 0.0
    %692 = vmatprep.subr.mxu0 0.0
    %693 = vmatpush1.msra.mxu0 0.0
    %694 = vmatprep.subr.mxu0 0.0
    %695 = vmatpush1.msra.mxu0 0.0
    %696 = vmatprep.subr.mxu0 0.0
    %697 = vmatpush1.msra.mxu0 0.0
    %698 = vmatprep.subr.mxu0 0.0
    %699 = vmatpush1.msra.mxu0 0.0
    %700 = vmatprep.subr.mxu0 0.0
    %701 = vmatpush1.msra.mxu0 0.0
    %702 = vmatprep.subr.mxu0 0.0
    %703 = vmatpush1.msra.mxu0 0.0
    %704 = vmatprep.subr.mxu0 0.0
    %705 = vmatpush1.msra.mxu0 0.0
    %706 = vmatprep.subr.mxu0 0.0
    %707 = vmatpush1.msra.mxu0 0.0
    %708 = vmatprep.subr.mxu0 0.0
    %709 = vmatpush1.msra.mxu0 0.0
    %710 = vmatprep.subr.mxu0 0.0
    %711 = vmatpush1.msra.mxu0 0.0
    %712 = vmatprep.subr.mxu0 0.0
    %713 = vmatpush1.msra.mxu0 0.0
    %714 = vmatprep.subr.mxu0 0.0
    %715 = vmatpush1.msra.mxu0 0.0
    %716 = vmatprep.mubr.f32.mxu0 0.0
    %717 = vmatmul.mubr.f32.gmra.mrb[0].mxu0 %v143
    %v718 = vpop.f32.mrb[0].mxu0
    %v719 = vadd.f32 0.0, %v718
    %v720 = vpop.f32.mrb[0].mxu0
    %721 = vmatprep.mubr.f32.mxu0 0.0
    %722 = vmatmul.mubr.f32.gmra.mrb[0].mxu0 %v146
    %v723 = vpop.f32.mrb[0].mxu0
    %v724 = vadd.f32 0.0, %v723
    %v725 = vpop.f32.mrb[0].mxu0
    %726 = vdwg.mxu0
    %v727 = vadd.f32 %v126, %v719
    %v728 = vadd.f32 %v131, %v724
    %v729 = vxor.u32 %v727, 2147483648
    %v730 = vmul.f32 %v729, 1.442695
    %v731 = vpow.pop %v730
    %v732 = vadd.f32 %v731, 1.0
    %v733 = vrcp.pop %v732
    %v734 = vmul.f32 1.0, %v733
    %v735 = vxor.u32 %v728, 2147483648
    %v736 = vmul.f32 %v735, 1.442695
    %v737 = vpow.pop %v736
    %v738 = vadd.f32 %v737, 1.0
    %v739 = vrcp.pop %v738
    %v740 = vmul.f32 1.0, %v739
    %v741 = vmul.f32 %v734, %v650
    %742 = vmatprep.subr.mxu0 0.0
    %743 = vmatpush1.msra.mxu0 %v741
    %744 = vmatprep.subr.mxu0 0.0
    %745 = vmatpush1.msra.mxu0 0.0
    %746 = vmatprep.subr.mxu0 0.0
    %747 = vmatpush1.msra.mxu0 0.0
    %748 = vmatprep.subr.mxu0 0.0
    %749 = vmatpush1.msra.mxu0 0.0
    %750 = vmatprep.subr.mxu0 0.0
    %751 = vmatpush1.msra.mxu0 0.0
    %752 = vmatprep.subr.mxu0 0.0
    %753 = vmatpush1.msra.mxu0 0.0
    %754 = vmatprep.subr.mxu0 0.0
    %755 = vmatpush1.msra.mxu0 0.0
    %756 = vmatprep.subr.mxu0 0.0
    %757 = vmatpush1.msra.mxu0 0.0
    %758 = vmatprep.subr.mxu0 0.0
    %759 = vmatpush1.msra.mxu0 0.0
    %760 = vmatprep.subr.mxu0 0.0
    %761 = vmatpush1.msra.mxu0 0.0
    %762 = vmatprep.subr.mxu0 0.0
    %763 = vmatpush1.msra.mxu0 0.0
    %764 = vmatprep.subr.mxu0 0.0
    %765 = vmatpush1.msra.mxu0 0.0
    %766 = vmatprep.subr.mxu0 0.0
    %767 = vmatpush1.msra.mxu0 0.0
    %768 = vmatprep.subr.mxu0 0.0
    %769 = vmatpush1.msra.mxu0 0.0
    %770 = vmatprep.subr.mxu0 0.0
    %771 = vmatpush1.msra.mxu0 0.0
    %772 = vmatprep.subr.mxu0 0.0
    %773 = vmatpush1.msra.mxu0 0.0
    %774 = vmatprep.subr.mxu0 0.0
    %775 = vmatpush1.msra.mxu0 0.0
    %776 = vmatprep.subr.mxu0 0.0
    %777 = vmatpush1.msra.mxu0 0.0
    %778 = vmatprep.subr.mxu0 0.0
    %779 = vmatpush1.msra.mxu0 0.0
    %780 = vmatprep.subr.mxu0 0.0
    %781 = vmatpush1.msra.mxu0 0.0
    %782 = vmatprep.subr.mxu0 0.0
    %783 = vmatpush1.msra.mxu0 0.0
    %784 = vmatprep.subr.mxu0 0.0
    %785 = vmatpush1.msra.mxu0 0.0
    %786 = vmatprep.subr.mxu0 0.0
    %787 = vmatpush1.msra.mxu0 0.0
    %788 = vmatprep.subr.mxu0 0.0
    %789 = vmatpush1.msra.mxu0 0.0
    %790 = vmatprep.subr.mxu0 0.0
    %791 = vmatpush1.msra.mxu0 0.0
    %792 = vmatprep.subr.mxu0 0.0
    %793 = vmatpush1.msra.mxu0 0.0
    %794 = vmatprep.subr.mxu0 0.0
    %795 = vmatpush1.msra.mxu0 0.0
    %796 = vmatprep.subr.mxu0 0.0
    %797 = vmatpush1.msra.mxu0 0.0
    %798 = vmatprep.subr.mxu0 0.0
    %799 = vmatpush1.msra.mxu0 0.0
    %800 = vmatprep.subr.mxu0 0.0
    %801 = vmatpush1.msra.mxu0 0.0
    %802 = vmatprep.subr.mxu0 0.0
    %803 = vmatpush1.msra.mxu0 0.0
    %804 = vmatprep.subr.mxu0 0.0
    %805 = vmatpush1.msra.mxu0 0.0
    %806 = vmatprep.mubr.f32.mxu0 0.0
    %807 = vmatmul.mubr.f32.gmra.mrb[0].mxu0 %v239
    %v808 = vpop.f32.mrb[0].mxu0
    %v809 = vadd.f32 0.0, %v808
    %v810 = vpop.f32.mrb[0].mxu0
    %811 = vdwg.mxu0
    %v812 = vadd.f32 %v136, %v809
    %v813 = vtanh.pop %v812
    %v814 = vmul.f32 %v740, %v650
    %v815 = vsub.f32 1.0, %v740
    %v816 = vmul.f32 %v815, %v813
    %v817 = vadd.f32 %v814, %v816
    %818 = vst [vmem:[#allocation2 + $0x18] sm:$0xff] %v817
    %819 = vmatprep.subr.mxu0 0.0
    %820 = vmatpush1.msra.mxu0 %v817
    %821 = vmatprep.subr.mxu0 0.0
    %822 = vmatpush1.msra.mxu0 0.0
    %823 = vmatprep.subr.mxu0 0.0
    %824 = vmatpush1.msra.mxu0 0.0
    %825 = vmatprep.subr.mxu0 0.0
    %826 = vmatpush1.msra.mxu0 0.0
    %827 = vmatprep.subr.mxu0 0.0
    %828 = vmatpush1.msra.mxu0 0.0
    %829 = vmatprep.subr.mxu0 0.0
    %830 = vmatpush1.msra.mxu0 0.0
    %831 = vmatprep.subr.mxu0 0.0
    %832 = vmatpush1.msra.mxu0 0.0
    %833 = vmatprep.subr.mxu0 0.0
    %834 = vmatpush1.msra.mxu0 0.0
    %835 = vmatprep.subr.mxu0 0.0
    %836 = vmatpush1.msra.mxu0 0.0
    %837 = vmatprep.subr.mxu0 0.0
    %838 = vmatpush1.msra.mxu0 0.0
    %839 = vmatprep.subr.mxu0 0.0
    %840 = vmatpush1.msra.mxu0 0.0
    %841 = vmatprep.subr.mxu0 0.0
    %842 = vmatpush1.msra.mxu0 0.0
    %843 = vmatprep.subr.mxu0 0.0
    %844 = vmatpush1.msra.mxu0 0.0
    %845 = vmatprep.subr.mxu0 0.0
    %846 = vmatpush1.msra.mxu0 0.0
    %847 = vmatprep.subr.mxu0 0.0
    %848 = vmatpush1.msra.mxu0 0.0
    %849 = vmatprep.subr.mxu0 0.0
    %850 = vmatpush1.msra.mxu0 0.0
    %851 = vmatprep.subr.mxu0 0.0
    %852 = vmatpush1.msra.mxu0 0.0
    %853 = vmatprep.subr.mxu0 0.0
    %854 = vmatpush1.msra.mxu0 0.0
    %855 = vmatprep.subr.mxu0 0.0
    %856 = vmatpush1.msra.mxu0 0.0
    %857 = vmatprep.subr.mxu0 0.0
    %858 = vmatpush1.msra.mxu0 0.0
    %859 = vmatprep.subr.mxu0 0.0
    %860 = vmatpush1.msra.mxu0 0.0
    %861 = vmatprep.subr.mxu0 0.0
    %862 = vmatpush1.msra.mxu0 0.0
    %863 = vmatprep.subr.mxu0 0.0
    %864 = vmatpush1.msra.mxu0 0.0
    %865 = vmatprep.subr.mxu0 0.0
    %866 = vmatpush1.msra.mxu0 0.0
    %867 = vmatprep.subr.mxu0 0.0
    %868 = vmatpush1.msra.mxu0 0.0
    %869 = vmatprep.subr.mxu0 0.0
    %870 = vmatpush1.msra.mxu0 0.0
    %871 = vmatprep.subr.mxu0 0.0
    %872 = vmatpush1.msra.mxu0 0.0
    %873 = vmatprep.subr.mxu0 0.0
    %874 = vmatpush1.msra.mxu0 0.0
    %875 = vmatprep.subr.mxu0 0.0
    %876 = vmatpush1.msra.mxu0 0.0
    %877 = vmatprep.subr.mxu0 0.0
    %878 = vmatpush1.msra.mxu0 0.0
    %879 = vmatprep.subr.mxu0 0.0
    %880 = vmatpush1.msra.mxu0 0.0
    %881 = vmatprep.subr.mxu0 0.0
    %882 = vmatpush1.msra.mxu0 0.0
    %883 = vmatprep.mubr.f32.mxu0 0.0
    %884 = vmatmul.mubr.f32.gmra.mrb[0].mxu0 %v143
    %v885 = vpop.f32.mrb[0].mxu0
    %v886 = vadd.f32 0.0, %v885
    %v887 = vpop.f32.mrb[0].mxu0
    %888 = vmatprep.mubr.f32.mxu0 0.0
    %889 = vmatmul.mubr.f32.gmra.mrb[0].mxu0 %v146
    %v890 = vpop.f32.mrb[0].mxu0
    %v891 = vadd.f32 0.0, %v890
    %v892 = vpop.f32.mrb[0].mxu0
    %893 = vdwg.mxu0
    %v894 = vadd.f32 %v126, %v886
    %v895 = vadd.f32 %v131, %v891
    %v896 = vxor.u32 %v894, 2147483648
    %v897 = vmul.f32 %v896, 1.442695
    %v898 = vpow.pop %v897
    %v899 = vadd.f32 %v898, 1.0
    %v900 = vrcp.pop %v899
    %v901 = vmul.f32 1.0, %v900
    %v902 = vxor.u32 %v895, 2147483648
    %v903 = vmul.f32 %v902, 1.442695
    %v904 = vpow.pop %v903
    %v905 = vadd.f32 %v904, 1.0
    %v906 = vrcp.pop %v905
    %v907 = vmul.f32 1.0, %v906
    %v908 = vmul.f32 %v901, %v817
    %909 = vmatprep.subr.mxu0 0.0
    %910 = vmatpush1.msra.mxu0 %v908
    %911 = vmatprep.subr.mxu0 0.0
    %912 = vmatpush1.msra.mxu0 0.0
    %913 = vmatprep.subr.mxu0 0.0
    %914 = vmatpush1.msra.mxu0 0.0
    %915 = vmatprep.subr.mxu0 0.0
    %916 = vmatpush1.msra.mxu0 0.0
    %917 = vmatprep.subr.mxu0 0.0
    %918 = vmatpush1.msra.mxu0 0.0
    %919 = vmatprep.subr.mxu0 0.0
    %920 = vmatpush1.msra.mxu0 0.0
    %921 = vmatprep.subr.mxu0 0.0
    %922 = vmatpush1.msra.mxu0 0.0
    %923 = vmatprep.subr.mxu0 0.0
    %924 = vmatpush1.msra.mxu0 0.0
    %925 = vmatprep.subr.mxu0 0.0
    %926 = vmatpush1.msra.mxu0 0.0
    %927 = vmatprep.subr.mxu0 0.0
    %928 = vmatpush1.msra.mxu0 0.0
    %929 = vmatprep.subr.mxu0 0.0
    %930 = vmatpush1.msra.mxu0 0.0
    %931 = vmatprep.subr.mxu0 0.0
    %932 = vmatpush1.msra.mxu0 0.0
    %933 = vmatprep.subr.mxu0 0.0
    %934 = vmatpush1.msra.mxu0 0.0
    %935 = vmatprep.subr.mxu0 0.0
    %936 = vmatpush1.msra.mxu0 0.0
    %937 = vmatprep.subr.mxu0 0.0
    %938 = vmatpush1.msra.mxu0 0.0
    %939 = vmatprep.subr.mxu0 0.0
    %940 = vmatpush1.msra.mxu0 0.0
    %941 = vmatprep.subr.mxu0 0.0
    %942 = vmatpush1.msra.mxu0 0.0
    %943 = vmatprep.subr.mxu0 0.0
    %944 = vmatpush1.msra.mxu0 0.0
    %945 = vmatprep.subr.mxu0 0.0
    %946 = vmatpush1.msra.mxu0 0.0
    %947 = vmatprep.subr.mxu0 0.0
    %948 = vmatpush1.msra.mxu0 0.0
    %949 = vmatprep.subr.mxu0 0.0
    %950 = vmatpush1.msra.mxu0 0.0
    %951 = vmatprep.subr.mxu0 0.0
    %952 = vmatpush1.msra.mxu0 0.0
    %953 = vmatprep.subr.mxu0 0.0
    %954 = vmatpush1.msra.mxu0 0.0
    %955 = vmatprep.subr.mxu0 0.0
    %956 = vmatpush1.msra.mxu0 0.0
    %957 = vmatprep.subr.mxu0 0.0
    %958 = vmatpush1.msra.mxu0 0.0
    %959 = vmatprep.subr.mxu0 0.0
    %960 = vmatpush1.msra.mxu0 0.0
    %961 = vmatprep.subr.mxu0 0.0
    %962 = vmatpush1.msra.mxu0 0.0
    %963 = vmatprep.subr.mxu0 0.0
    %964 = vmatpush1.msra.mxu0 0.0
    %965 = vmatprep.subr.mxu0 0.0
    %966 = vmatpush1.msra.mxu0 0.0
    %967 = vmatprep.subr.mxu0 0.0
    %968 = vmatpush1.msra.mxu0 0.0
    %969 = vmatprep.subr.mxu0 0.0
    %970 = vmatpush1.msra.mxu0 0.0
    %971 = vmatprep.subr.mxu0 0.0
    %972 = vmatpush1.msra.mxu0 0.0
    %973 = vmatprep.mubr.f32.mxu0 0.0
    %974 = vmatmul.mubr.f32.gmra.mrb[0].mxu0 %v239
    %v975 = vpop.f32.mrb[0].mxu0
    %v976 = vadd.f32 0.0, %v975
    %v977 = vpop.f32.mrb[0].mxu0
    %978 = vdwg.mxu0
    %v979 = vadd.f32 %v136, %v976
    %v980 = vtanh.pop %v979
    %v981 = vmul.f32 %v907, %v817
    %v982 = vsub.f32 1.0, %v907
    %v983 = vmul.f32 %v982, %v980
    %v984 = vadd.f32 %v981, %v983
    %985 = vst [vmem:[#allocation2 + $0x20] sm:$0xff] %v984
    %986 = vmatprep.subr.mxu0 0.0
    %987 = vmatpush1.msra.mxu0 %v984
    %988 = vmatprep.subr.mxu0 0.0
    %989 = vmatpush1.msra.mxu0 0.0
    %990 = vmatprep.subr.mxu0 0.0
    %991 = vmatpush1.msra.mxu0 0.0
    %992 = vmatprep.subr.mxu0 0.0
    %993 = vmatpush1.msra.mxu0 0.0
    %994 = vmatprep.subr.mxu0 0.0
    %995 = vmatpush1.msra.mxu0 0.0
    %996 = vmatprep.subr.mxu0 0.0
    %997 = vmatpush1.msra.mxu0 0.0
    %998 = vmatprep.subr.mxu0 0.0
    %999 = vmatpush1.msra.mxu0 0.0
    %1000 = vmatprep.subr.mxu0 0.0
    %1001 = vmatpush1.msra.mxu0 0.0
    %1002 = vmatprep.subr.mxu0 0.0
    %1003 = vmatpush1.msra.mxu0 0.0
    %1004 = vmatprep.subr.mxu0 0.0
    %1005 = vmatpush1.msra.mxu0 0.0
    %1006 = vmatprep.subr.mxu0 0.0
    %1007 = vmatpush1.msra.mxu0 0.0
    %1008 = vmatprep.subr.mxu0 0.0
    %1009 = vmatpush1.msra.mxu0 0.0
    %1010 = vmatprep.subr.mxu0 0.0
    %1011 = vmatpush1.msra.mxu0 0.0
    %1012 = vmatprep.subr.mxu0 0.0
    %1013 = vmatpush1.msra.mxu0 0.0
    %1014 = vmatprep.subr.mxu0 0.0
    %1015 = vmatpush1.msra.mxu0 0.0
    %1016 = vmatprep.subr.mxu0 0.0
    %1017 = vmatpush1.msra.mxu0 0.0
    %1018 = vmatprep.subr.mxu0 0.0
    %1019 = vmatpush1.msra.mxu0 0.0
    %1020 = vmatprep.subr.mxu0 0.0
    %1021 = vmatpush1.msra.mxu0 0.0
    %1022 = vmatprep.subr.mxu0 0.0
    %1023 = vmatpush1.msra.mxu0 0.0
    %1024 = vmatprep.subr.mxu0 0.0
    %1025 = vmatpush1.msra.mxu0 0.0
    %1026 = vmatprep.subr.mxu0 0.0
    %1027 = vmatpush1.msra.mxu0 0.0
    %1028 = vmatprep.subr.mxu0 0.0
    %1029 = vmatpush1.msra.mxu0 0.0
    %1030 = vmatprep.subr.mxu0 0.0
    %1031 = vmatpush1.msra.mxu0 0.0
    %1032 = vmatprep.subr.mxu0 0.0
    %1033 = vmatpush1.msra.mxu0 0.0
    %1034 = vmatprep.subr.mxu0 0.0
    %1035 = vmatpush1.msra.mxu0 0.0
    %1036 = vmatprep.subr.mxu0 0.0
    %1037 = vmatpush1.msra.mxu0 0.0
    %1038 = vmatprep.subr.mxu0 0.0
    %1039 = vmatpush1.msra.mxu0 0.0
    %1040 = vmatprep.subr.mxu0 0.0
    %1041 = vmatpush1.msra.mxu0 0.0
    %1042 = vmatprep.subr.mxu0 0.0
    %1043 = vmatpush1.msra.mxu0 0.0
    %1044 = vmatprep.subr.mxu0 0.0
    %1045 = vmatpush1.msra.mxu0 0.0
    %1046 = vmatprep.subr.mxu0 0.0
    %1047 = vmatpush1.msra.mxu0 0.0
    %1048 = vmatprep.subr.mxu0 0.0
    %1049 = vmatpush1.msra.mxu0 0.0
    %1050 = vmatprep.mubr.f32.mxu0 0.0
    %1051 = vmatmul.mubr.f32.gmra.mrb[0].mxu0 %v143
    %v1052 = vpop.f32.mrb[0].mxu0
    %v1053 = vadd.f32 0.0, %v1052
    %v1054 = vpop.f32.mrb[0].mxu0
    %1055 = vmatprep.mubr.f32.mxu0 0.0
    %1056 = vmatmul.mubr.f32.gmra.mrb[0].mxu0 %v146
    %v1057 = vpop.f32.mrb[0].mxu0
    %v1058 = vadd.f32 0.0, %v1057
    %v1059 = vpop.f32.mrb[0].mxu0
    %1060 = vdwg.mxu0
    %v1061 = vadd.f32 %v126, %v1053
    %v1062 = vadd.f32 %v131, %v1058
    %v1063 = vxor.u32 %v1061, 2147483648
    %v1064 = vmul.f32 %v1063, 1.442695
    %v1065 = vpow.pop %v1064
    %v1066 = vadd.f32 %v1065, 1.0
    %v1067 = vrcp.pop %v1066
    %v1068 = vmul.f32 1.0, %v1067
    %v1069 = vxor.u32 %v1062, 2147483648
    %v1070 = vmul.f32 %v1069, 1.442695
    %v1071 = vpow.pop %v1070
    %v1072 = vadd.f32 %v1071, 1.0
    %v1073 = vrcp.pop %v1072
    %v1074 = vmul.f32 1.0, %v1073
    %v1075 = vmul.f32 %v1068, %v984
    %1076 = vmatprep.subr.mxu0 0.0
    %1077 = vmatpush1.msra.mxu0 %v1075
    %1078 = vmatprep.subr.mxu0 0.0
    %1079 = vmatpush1.msra.mxu0 0.0
    %1080 = vmatprep.subr.mxu0 0.0
    %1081 = vmatpush1.msra.mxu0 0.0
    %1082 = vmatprep.subr.mxu0 0.0
    %1083 = vmatpush1.msra.mxu0 0.0
    %1084 = vmatprep.subr.mxu0 0.0
    %1085 = vmatpush1.msra.mxu0 0.0
    %1086 = vmatprep.subr.mxu0 0.0
    %1087 = vmatpush1.msra.mxu0 0.0
    %1088 = vmatprep.subr.mxu0 0.0
    %1089 = vmatpush1.msra.mxu0 0.0
    %1090 = vmatprep.subr.mxu0 0.0
    %1091 = vmatpush1.msra.mxu0 0.0
    %1092 = vmatprep.subr.mxu0 0.0
    %1093 = vmatpush1.msra.mxu0 0.0
    %1094 = vmatprep.subr.mxu0 0.0
    %1095 = vmatpush1.msra.mxu0 0.0
    %1096 = vmatprep.subr.mxu0 0.0
    %1097 = vmatpush1.msra.mxu0 0.0
    %1098 = vmatprep.subr.mxu0 0.0
    %1099 = vmatpush1.msra.mxu0 0.0
    %1100 = vmatprep.subr.mxu0 0.0
    %1101 = vmatpush1.msra.mxu0 0.0
    %1102 = vmatprep.subr.mxu0 0.0
    %1103 = vmatpush1.msra.mxu0 0.0
    %1104 = vmatprep.subr.mxu0 0.0
    %1105 = vmatpush1.msra.mxu0 0.0
    %1106 = vmatprep.subr.mxu0 0.0
    %1107 = vmatpush1.msra.mxu0 0.0
    %1108 = vmatprep.subr.mxu0 0.0
    %1109 = vmatpush1.msra.mxu0 0.0
    %1110 = vmatprep.subr.mxu0 0.0
    %1111 = vmatpush1.msra.mxu0 0.0
    %1112 = vmatprep.subr.mxu0 0.0
    %1113 = vmatpush1.msra.mxu0 0.0
    %1114 = vmatprep.subr.mxu0 0.0
    %1115 = vmatpush1.msra.mxu0 0.0
    %1116 = vmatprep.subr.mxu0 0.0
    %1117 = vmatpush1.msra.mxu0 0.0
    %1118 = vmatprep.subr.mxu0 0.0
    %1119 = vmatpush1.msra.mxu0 0.0
    %1120 = vmatprep.subr.mxu0 0.0
    %1121 = vmatpush1.msra.mxu0 0.0
    %1122 = vmatprep.subr.mxu0 0.0
    %1123 = vmatpush1.msra.mxu0 0.0
    %1124 = vmatprep.subr.mxu0 0.0
    %1125 = vmatpush1.msra.mxu0 0.0
    %1126 = vmatprep.subr.mxu0 0.0
    %1127 = vmatpush1.msra.mxu0 0.0
    %1128 = vmatprep.subr.mxu0 0.0
    %1129 = vmatpush1.msra.mxu0 0.0
    %1130 = vmatprep.subr.mxu0 0.0
    %1131 = vmatpush1.msra.mxu0 0.0
    %1132 = vmatprep.subr.mxu0 0.0
    %1133 = vmatpush1.msra.mxu0 0.0
    %1134 = vmatprep.subr.mxu0 0.0
    %1135 = vmatpush1.msra.mxu0 0.0
    %1136 = vmatprep.subr.mxu0 0.0
    %1137 = vmatpush1.msra.mxu0 0.0
    %1138 = vmatprep.subr.mxu0 0.0
    %1139 = vmatpush1.msra.mxu0 0.0
    %1140 = vmatprep.mubr.f32.mxu0 0.0
    %1141 = vmatmul.mubr.f32.gmra.mrb[0].mxu0 %v239
    %v1142 = vpop.f32.mrb[0].mxu0
    %v1143 = vadd.f32 0.0, %v1142
    %v1144 = vpop.f32.mrb[0].mxu0
    %1145 = vdwg.mxu0
    %v1146 = vadd.f32 %v136, %v1143
    %v1147 = vtanh.pop %v1146
    %v1148 = vmul.f32 %v1074, %v984
    %v1149 = vsub.f32 1.0, %v1074
    %v1150 = vmul.f32 %v1149, %v1147
    %v1151 = vadd.f32 %v1148, %v1150
    %1152 = vst [vmem:[#allocation2 + $0x28] sm:$0xff] %v1151
    %1153 = vmatprep.subr.mxu0 0.0
    %1154 = vmatpush1.msra.mxu0 %v1151
    %1155 = vmatprep.subr.mxu0 0.0
    %1156 = vmatpush1.msra.mxu0 0.0
    %1157 = vmatprep.subr.mxu0 0.0
    %1158 = vmatpush1.msra.mxu0 0.0
    %1159 = vmatprep.subr.mxu0 0.0
    %1160 = vmatpush1.msra.mxu0 0.0
    %1161 = vmatprep.subr.mxu0 0.0
    %1162 = vmatpush1.msra.mxu0 0.0
    %1163 = vmatprep.subr.mxu0 0.0
    %1164 = vmatpush1.msra.mxu0 0.0
    %1165 = vmatprep.subr.mxu0 0.0
    %1166 = vmatpush1.msra.mxu0 0.0
    %1167 = vmatprep.subr.mxu0 0.0
    %1168 = vmatpush1.msra.mxu0 0.0
    %1169 = vmatprep.subr.mxu0 0.0
    %1170 = vmatpush1.msra.mxu0 0.0
    %1171 = vmatprep.subr.mxu0 0.0
    %1172 = vmatpush1.msra.mxu0 0.0
    %1173 = vmatprep.subr.mxu0 0.0
    %1174 = vmatpush1.msra.mxu0 0.0
    %1175 = vmatprep.subr.mxu0 0.0
    %1176 = vmatpush1.msra.mxu0 0.0
    %1177 = vmatprep.subr.mxu0 0.0
    %1178 = vmatpush1.msra.mxu0 0.0
    %1179 = vmatprep.subr.mxu0 0.0
    %1180 = vmatpush1.msra.mxu0 0.0
    %1181 = vmatprep.subr.mxu0 0.0
    %1182 = vmatpush1.msra.mxu0 0.0
    %1183 = vmatprep.subr.mxu0 0.0
    %1184 = vmatpush1.msra.mxu0 0.0
    %1185 = vmatprep.subr.mxu0 0.0
    %1186 = vmatpush1.msra.mxu0 0.0
    %1187 = vmatprep.subr.mxu0 0.0
    %1188 = vmatpush1.msra.mxu0 0.0
    %1189 = vmatprep.subr.mxu0 0.0
    %1190 = vmatpush1.msra.mxu0 0.0
    %1191 = vmatprep.subr.mxu0 0.0
    %1192 = vmatpush1.msra.mxu0 0.0
    %1193 = vmatprep.subr.mxu0 0.0
    %1194 = vmatpush1.msra.mxu0 0.0
    %1195 = vmatprep.subr.mxu0 0.0
    %1196 = vmatpush1.msra.mxu0 0.0
    %1197 = vmatprep.subr.mxu0 0.0
    %1198 = vmatpush1.msra.mxu0 0.0
    %1199 = vmatprep.subr.mxu0 0.0
    %1200 = vmatpush1.msra.mxu0 0.0
    %1201 = vmatprep.subr.mxu0 0.0
    %1202 = vmatpush1.msra.mxu0 0.0
    %1203 = vmatprep.subr.mxu0 0.0
    %1204 = vmatpush1.msra.mxu0 0.0
    %1205 = vmatprep.subr.mxu0 0.0
    %1206 = vmatpush1.msra.mxu0 0.0
    %1207 = vmatprep.subr.mxu0 0.0
    %1208 = vmatpush1.msra.mxu0 0.0
    %1209 = vmatprep.subr.mxu0 0.0
    %1210 = vmatpush1.msra.mxu0 0.0
    %1211 = vmatprep.subr.mxu0 0.0
    %1212 = vmatpush1.msra.mxu0 0.0
    %1213 = vmatprep.subr.mxu0 0.0
    %1214 = vmatpush1.msra.mxu0 0.0
    %1215 = vmatprep.subr.mxu0 0.0
    %1216 = vmatpush1.msra.mxu0 0.0
    %1217 = vmatprep.mubr.f32.mxu0 0.0
    %1218 = vmatmul.mubr.f32.gmra.mrb[0].mxu0 %v143
    %v1219 = vpop.f32.mrb[0].mxu0
    %v1220 = vadd.f32 0.0, %v1219
    %v1221 = vpop.f32.mrb[0].mxu0
    %1222 = vmatprep.mubr.f32.mxu0 0.0
    %1223 = vmatmul.mubr.f32.gmra.mrb[0].mxu0 %v146
    %v1224 = vpop.f32.mrb[0].mxu0
    %v1225 = vadd.f32 0.0, %v1224
    %v1226 = vpop.f32.mrb[0].mxu0
    %1227 = vdwg.mxu0
    %v1228 = vadd.f32 %v126, %v1220
    %v1229 = vadd.f32 %v131, %v1225
    %v1230 = vxor.u32 %v1228, 2147483648
    %v1231 = vmul.f32 %v1230, 1.442695
    %v1232 = vpow.pop %v1231
    %v1233 = vadd.f32 %v1232, 1.0
    %v1234 = vrcp.pop %v1233
    %v1235 = vmul.f32 1.0, %v1234
    %v1236 = vxor.u32 %v1229, 2147483648
    %v1237 = vmul.f32 %v1236, 1.442695
    %v1238 = vpow.pop %v1237
    %v1239 = vadd.f32 %v1238, 1.0
    %v1240 = vrcp.pop %v1239
    %v1241 = vmul.f32 1.0, %v1240
    %v1242 = vmul.f32 %v1235, %v1151
    %1243 = vmatprep.subr.mxu0 0.0
    %1244 = vmatpush1.msra.mxu0 %v1242
    %1245 = vmatprep.subr.mxu0 0.0
    %1246 = vmatpush1.msra.mxu0 0.0
    %1247 = vmatprep.subr.mxu0 0.0
    %1248 = vmatpush1.msra.mxu0 0.0
    %1249 = vmatprep.subr.mxu0 0.0
    %1250 = vmatpush1.msra.mxu0 0.0
    %1251 = vmatprep.subr.mxu0 0.0
    %1252 = vmatpush1.msra.mxu0 0.0
    %1253 = vmatprep.subr.mxu0 0.0
    %1254 = vmatpush1.msra.mxu0 0.0
    %1255 = vmatprep.subr.mxu0 0.0
    %1256 = vmatpush1.msra.mxu0 0.0
    %1257 = vmatprep.subr.mxu0 0.0
    %1258 = vmatpush1.msra.mxu0 0.0
    %1259 = vmatprep.subr.mxu0 0.0
    %1260 = vmatpush1.msra.mxu0 0.0
    %1261 = vmatprep.subr.mxu0 0.0
    %1262 = vmatpush1.msra.mxu0 0.0
    %1263 = vmatprep.subr.mxu0 0.0
    %1264 = vmatpush1.msra.mxu0 0.0
    %1265 = vmatprep.subr.mxu0 0.0
    %1266 = vmatpush1.msra.mxu0 0.0
    %1267 = vmatprep.subr.mxu0 0.0
    %1268 = vmatpush1.msra.mxu0 0.0
    %1269 = vmatprep.subr.mxu0 0.0
    %1270 = vmatpush1.msra.mxu0 0.0
    %1271 = vmatprep.subr.mxu0 0.0
    %1272 = vmatpush1.msra.mxu0 0.0
    %1273 = vmatprep.subr.mxu0 0.0
    %1274 = vmatpush1.msra.mxu0 0.0
    %1275 = vmatprep.subr.mxu0 0.0
    %1276 = vmatpush1.msra.mxu0 0.0
    %1277 = vmatprep.subr.mxu0 0.0
    %1278 = vmatpush1.msra.mxu0 0.0
    %1279 = vmatprep.subr.mxu0 0.0
    %1280 = vmatpush1.msra.mxu0 0.0
    %1281 = vmatprep.subr.mxu0 0.0
    %1282 = vmatpush1.msra.mxu0 0.0
    %1283 = vmatprep.subr.mxu0 0.0
    %1284 = vmatpush1.msra.mxu0 0.0
    %1285 = vmatprep.subr.mxu0 0.0
    %1286 = vmatpush1.msra.mxu0 0.0
    %1287 = vmatprep.subr.mxu0 0.0
    %1288 = vmatpush1.msra.mxu0 0.0
    %1289 = vmatprep.subr.mxu0 0.0
    %1290 = vmatpush1.msra.mxu0 0.0
    %1291 = vmatprep.subr.mxu0 0.0
    %1292 = vmatpush1.msra.mxu0 0.0
    %1293 = vmatprep.subr.mxu0 0.0
    %1294 = vmatpush1.msra.mxu0 0.0
    %1295 = vmatprep.subr.mxu0 0.0
    %1296 = vmatpush1.msra.mxu0 0.0
    %1297 = vmatprep.subr.mxu0 0.0
    %1298 = vmatpush1.msra.mxu0 0.0
    %1299 = vmatprep.subr.mxu0 0.0
    %1300 = vmatpush1.msra.mxu0 0.0
    %1301 = vmatprep.subr.mxu0 0.0
    %1302 = vmatpush1.msra.mxu0 0.0
    %1303 = vmatprep.subr.mxu0 0.0
    %1304 = vmatpush1.msra.mxu0 0.0
    %1305 = vmatprep.subr.mxu0 0.0
    %1306 = vmatpush1.msra.mxu0 0.0
    %1307 = vmatprep.mubr.f32.mxu0 0.0
    %1308 = vmatmul.mubr.f32.gmra.mrb[0].mxu0 %v239
    %v1309 = vpop.f32.mrb[0].mxu0
    %v1310 = vadd.f32 0.0, %v1309
    %v1311 = vpop.f32.mrb[0].mxu0
    %1312 = vdwg.mxu0
    %v1313 = vadd.f32 %v136, %v1310
    %v1314 = vtanh.pop %v1313
    %v1315 = vmul.f32 %v1241, %v1151
    %v1316 = vsub.f32 1.0, %v1241
    %v1317 = vmul.f32 %v1316, %v1314
    %v1318 = vadd.f32 %v1315, %v1317
    %1319 = vst [vmem:[#allocation2 + $0x30] sm:$0xff] %v1318
    %1320 = vmatprep.subr.mxu0 0.0
    %1321 = vmatpush1.msra.mxu0 %v1318
    %1322 = vmatprep.subr.mxu0 0.0
    %1323 = vmatpush1.msra.mxu0 0.0
    %1324 = vmatprep.subr.mxu0 0.0
    %1325 = vmatpush1.msra.mxu0 0.0
    %1326 = vmatprep.subr.mxu0 0.0
    %1327 = vmatpush1.msra.mxu0 0.0
    %1328 = vmatprep.subr.mxu0 0.0
    %1329 = vmatpush1.msra.mxu0 0.0
    %1330 = vmatprep.subr.mxu0 0.0
    %1331 = vmatpush1.msra.mxu0 0.0
    %1332 = vmatprep.subr.mxu0 0.0
    %1333 = vmatpush1.msra.mxu0 0.0
    %1334 = vmatprep.subr.mxu0 0.0
    %1335 = vmatpush1.msra.mxu0 0.0
    %1336 = vmatprep.subr.mxu0 0.0
    %1337 = vmatpush1.msra.mxu0 0.0
    %1338 = vmatprep.subr.mxu0 0.0
    %1339 = vmatpush1.msra.mxu0 0.0
    %1340 = vmatprep.subr.mxu0 0.0
    %1341 = vmatpush1.msra.mxu0 0.0
    %1342 = vmatprep.subr.mxu0 0.0
    %1343 = vmatpush1.msra.mxu0 0.0
    %1344 = vmatprep.subr.mxu0 0.0
    %1345 = vmatpush1.msra.mxu0 0.0
    %1346 = vmatprep.subr.mxu0 0.0
    %1347 = vmatpush1.msra.mxu0 0.0
    %1348 = vmatprep.subr.mxu0 0.0
    %1349 = vmatpush1.msra.mxu0 0.0
    %1350 = vmatprep.subr.mxu0 0.0
    %1351 = vmatpush1.msra.mxu0 0.0
    %1352 = vmatprep.subr.mxu0 0.0
    %1353 = vmatpush1.msra.mxu0 0.0
    %1354 = vmatprep.subr.mxu0 0.0
    %1355 = vmatpush1.msra.mxu0 0.0
    %1356 = vmatprep.subr.mxu0 0.0
    %1357 = vmatpush1.msra.mxu0 0.0
    %1358 = vmatprep.subr.mxu0 0.0
    %1359 = vmatpush1.msra.mxu0 0.0
    %1360 = vmatprep.subr.mxu0 0.0
    %1361 = vmatpush1.msra.mxu0 0.0
    %1362 = vmatprep.subr.mxu0 0.0
    %1363 = vmatpush1.msra.mxu0 0.0
    %1364 = vmatprep.subr.mxu0 0.0
    %1365 = vmatpush1.msra.mxu0 0.0
    %1366 = vmatprep.subr.mxu0 0.0
    %1367 = vmatpush1.msra.mxu0 0.0
    %1368 = vmatprep.subr.mxu0 0.0
    %1369 = vmatpush1.msra.mxu0 0.0
    %1370 = vmatprep.subr.mxu0 0.0
    %1371 = vmatpush1.msra.mxu0 0.0
    %1372 = vmatprep.subr.mxu0 0.0
    %1373 = vmatpush1.msra.mxu0 0.0
    %1374 = vmatprep.subr.mxu0 0.0
    %1375 = vmatpush1.msra.mxu0 0.0
    %1376 = vmatprep.subr.mxu0 0.0
    %1377 = vmatpush1.msra.mxu0 0.0
    %1378 = vmatprep.subr.mxu0 0.0
    %1379 = vmatpush1.msra.mxu0 0.0
    %1380 = vmatprep.subr.mxu0 0.0
    %1381 = vmatpush1.msra.mxu0 0.0
    %1382 = vmatprep.subr.mxu0 0.0
    %1383 = vmatpush1.msra.mxu0 0.0
    %1384 = vmatprep.mubr.f32.mxu0 0.0
    %1385 = vmatmul.mubr.f32.gmra.mrb[0].mxu0 %v143
    %v1386 = vpop.f32.mrb[0].mxu0
    %v1387 = vadd.f32 0.0, %v1386
    %v1388 = vpop.f32.mrb[0].mxu0
    %1389 = vmatprep.mubr.f32.mxu0 0.0
    %1390 = vmatmul.mubr.f32.gmra.mrb[0].mxu0 %v146
    %v1391 = vpop.f32.mrb[0].mxu0
    %v1392 = vadd.f32 0.0, %v1391
    %v1393 = vpop.f32.mrb[0].mxu0
    %1394 = vdwg.mxu0
    %v1395 = vadd.f32 %v126, %v1387
    %v1396 = vadd.f32 %v131, %v1392
    %v1397 = vxor.u32 %v1395, 2147483648
    %v1398 = vmul.f32 %v1397, 1.442695
    %v1399 = vpow.pop %v1398
    %v1400 = vadd.f32 %v1399, 1.0
    %v1401 = vrcp.pop %v1400
    %v1402 = vmul.f32 1.0, %v1401
    %v1403 = vxor.u32 %v1396, 2147483648
    %v1404 = vmul.f32 %v1403, 1.442695
    %v1405 = vpow.pop %v1404
    %v1406 = vadd.f32 %v1405, 1.0
    %v1407 = vrcp.pop %v1406
    %v1408 = vmul.f32 1.0, %v1407
    %v1409 = vmul.f32 %v1402, %v1318
    %1410 = vmatprep.subr.mxu0 0.0
    %1411 = vmatpush1.msra.mxu0 %v1409
    %1412 = vmatprep.subr.mxu0 0.0
    %1413 = vmatpush1.msra.mxu0 0.0
    %1414 = vmatprep.subr.mxu0 0.0
    %1415 = vmatpush1.msra.mxu0 0.0
    %1416 = vmatprep.subr.mxu0 0.0
    %1417 = vmatpush1.msra.mxu0 0.0
    %1418 = vmatprep.subr.mxu0 0.0
    %1419 = vmatpush1.msra.mxu0 0.0
    %1420 = vmatprep.subr.mxu0 0.0
    %1421 = vmatpush1.msra.mxu0 0.0
    %1422 = vmatprep.subr.mxu0 0.0
    %1423 = vmatpush1.msra.mxu0 0.0
    %1424 = vmatprep.subr.mxu0 0.0
    %1425 = vmatpush1.msra.mxu0 0.0
    %1426 = vmatprep.subr.mxu0 0.0
    %1427 = vmatpush1.msra.mxu0 0.0
    %1428 = vmatprep.subr.mxu0 0.0
    %1429 = vmatpush1.msra.mxu0 0.0
    %1430 = vmatprep.subr.mxu0 0.0
    %1431 = vmatpush1.msra.mxu0 0.0
    %1432 = vmatprep.subr.mxu0 0.0
    %1433 = vmatpush1.msra.mxu0 0.0
    %1434 = vmatprep.subr.mxu0 0.0
    %1435 = vmatpush1.msra.mxu0 0.0
    %1436 = vmatprep.subr.mxu0 0.0
    %1437 = vmatpush1.msra.mxu0 0.0
    %1438 = vmatprep.subr.mxu0 0.0
    %1439 = vmatpush1.msra.mxu0 0.0
    %1440 = vmatprep.subr.mxu0 0.0
    %1441 = vmatpush1.msra.mxu0 0.0
    %1442 = vmatprep.subr.mxu0 0.0
    %1443 = vmatpush1.msra.mxu0 0.0
    %1444 = vmatprep.subr.mxu0 0.0
    %1445 = vmatpush1.msra.mxu0 0.0
    %1446 = vmatprep.subr.mxu0 0.0
    %1447 = vmatpush1.msra.mxu0 0.0
    %1448 = vmatprep.subr.mxu0 0.0
    %1449 = vmatpush1.msra.mxu0 0.0
    %1450 = vmatprep.subr.mxu0 0.0
    %1451 = vmatpush1.msra.mxu0 0.0
    %1452 = vmatprep.subr.mxu0 0.0
    %1453 = vmatpush1.msra.mxu0 0.0
    %1454 = vmatprep.subr.mxu0 0.0
    %1455 = vmatpush1.msra.mxu0 0.0
    %1456 = vmatprep.subr.mxu0 0.0
    %1457 = vmatpush1.msra.mxu0 0.0
    %1458 = vmatprep.subr.mxu0 0.0
    %1459 = vmatpush1.msra.mxu0 0.0
    %1460 = vmatprep.subr.mxu0 0.0
    %1461 = vmatpush1.msra.mxu0 0.0
    %1462 = vmatprep.subr.mxu0 0.0
    %1463 = vmatpush1.msra.mxu0 0.0
    %1464 = vmatprep.subr.mxu0 0.0
    %1465 = vmatpush1.msra.mxu0 0.0
    %1466 = vmatprep.subr.mxu0 0.0
    %1467 = vmatpush1.msra.mxu0 0.0
    %1468 = vmatprep.subr.mxu0 0.0
    %1469 = vmatpush1.msra.mxu0 0.0
    %1470 = vmatprep.subr.mxu0 0.0
    %1471 = vmatpush1.msra.mxu0 0.0
    %1472 = vmatprep.subr.mxu0 0.0
    %1473 = vmatpush1.msra.mxu0 0.0
    %1474 = vmatprep.mubr.f32.mxu0 0.0
    %1475 = vmatmul.mubr.f32.gmra.mrb[0].mxu0 %v239
    %v1476 = vpop.f32.mrb[0].mxu0
    %v1477 = vadd.f32 0.0, %v1476
    %v1478 = vpop.f32.mrb[0].mxu0
    %1479 = vdwg.mxu0
    %v1480 = vadd.f32 %v136, %v1477
    %v1481 = vtanh.pop %v1480
    %v1482 = vmul.f32 %v1408, %v1318
    %v1483 = vsub.f32 1.0, %v1408
    %v1484 = vmul.f32 %v1483, %v1481
    %v1485 = vadd.f32 %v1482, %v1484
    %1486 = vst [vmem:[#allocation2 + $0x38] sm:$0xff] %v1485
    %v1487 = vld [vmem:[%s4] sm:$0xff]
    %v1488 = vld [vmem:[#allocation2] sm:$0xff]
    %v1489 = vld [vmem:[#allocation2 + $0x8] sm:$0xff]
    %v1490 = vld [vmem:[#allocation2 + $0x10] sm:$0xff]
    %v1491 = vld [vmem:[#allocation2 + $0x18] sm:$0xff]
    %v1492 = vld [vmem:[#allocation2 + $0x20] sm:$0xff]
    %v1493 = vld [vmem:[#allocation2 + $0x28] sm:$0xff]
    %v1494 = vld [vmem:[#allocation2 + $0x30] sm:$0xff]
    %v1495 = vld [vmem:[#allocation2 + $0x38] sm:$0xff]
    %v1496 = vld [vmem:[%s6] sm:$0xff]
    %1498 = vset.pattern.permute.xlu0 0
    %1499 = vperm.xlu0 %1498, %v1496
    %v1500 = vpop.permute.xlu0 %1499
    %v1503 = vsel %vm49, %v1487, 0
    %1505 = vmatprep.subr.mxu0 %v1489
    %1506 = vmatpush1.msra.mxu0 %v1488
    %1507 = vmatprep.subr.mxu0 0.0
    %1508 = vmatpush1.msra.mxu0 0.0
    %1509 = vmatprep.subr.mxu0 0.0
    %1510 = vmatpush1.msra.mxu0 0.0
    %1511 = vmatprep.subr.mxu0 0.0
    %1512 = vmatpush1.msra.mxu0 0.0
    %1513 = vmatprep.subr.mxu0 0.0
    %1514 = vmatpush1.msra.mxu0 0.0
    %1515 = vmatprep.subr.mxu0 0.0
    %1516 = vmatpush1.msra.mxu0 0.0
    %1517 = vmatprep.subr.mxu0 0.0
    %1518 = vmatpush1.msra.mxu0 0.0
    %1519 = vmatprep.subr.mxu0 0.0
    %1520 = vmatpush1.msra.mxu0 0.0
    %1521 = vmatprep.subr.mxu0 0.0
    %1522 = vmatpush1.msra.mxu0 0.0
    %1523 = vmatprep.subr.mxu0 0.0
    %1524 = vmatpush1.msra.mxu0 0.0
    %1525 = vmatprep.subr.mxu0 0.0
    %1526 = vmatpush1.msra.mxu0 0.0
    %1527 = vmatprep.subr.mxu0 0.0
    %1528 = vmatpush1.msra.mxu0 0.0
    %1529 = vmatprep.subr.mxu0 0.0
    %1530 = vmatpush1.msra.mxu0 0.0
    %1531 = vmatprep.subr.mxu0 0.0
    %1532 = vmatpush1.msra.mxu0 0.0
    %1533 = vmatprep.subr.mxu0 0.0
    %1534 = vmatpush1.msra.mxu0 0.0
    %1535 = vmatprep.subr.mxu0 0.0
    %1536 = vmatpush1.msra.mxu0 0.0
    %1537 = vmatprep.subr.mxu0 0.0
    %1538 = vmatpush1.msra.mxu0 0.0
    %1539 = vmatprep.subr.mxu0 0.0
    %1540 = vmatpush1.msra.mxu0 0.0
    %1541 = vmatprep.subr.mxu0 0.0
    %1542 = vmatpush1.msra.mxu0 0.0
    %1543 = vmatprep.subr.mxu0 0.0
    %1544 = vmatpush1.msra.mxu0 0.0
    %1545 = vmatprep.subr.mxu0 0.0
    %1546 = vmatpush1.msra.mxu0 0.0
    %1547 = vmatprep.subr.mxu0 0.0
    %1548 = vmatpush1.msra.mxu0 0.0
    %1549 = vmatprep.subr.mxu0 0.0
    %1550 = vmatpush1.msra.mxu0 0.0
    %1551 = vmatprep.subr.mxu0 0.0
    %1552 = vmatpush1.msra.mxu0 0.0
    %1553 = vmatprep.subr.mxu0 0.0
    %1554 = vmatpush1.msra.mxu0 0.0
    %1555 = vmatprep.subr.mxu0 0.0
    %1556 = vmatpush1.msra.mxu0 0.0
    %1557 = vmatprep.subr.mxu0 0.0
    %1558 = vmatpush1.msra.mxu0 0.0
    %1559 = vmatprep.subr.mxu0 0.0
    %1560 = vmatpush1.msra.mxu0 0.0
    %1561 = vmatprep.subr.mxu0 0.0
    %1562 = vmatpush1.msra.mxu0 0.0
    %1563 = vmatprep.subr.mxu0 0.0
    %1564 = vmatpush1.msra.mxu0 0.0
    %1565 = vmatprep.subr.mxu0 0.0
    %1566 = vmatpush1.msra.mxu0 0.0
    %1567 = vmatprep.subr.mxu0 0.0
    %1568 = vmatpush1.msra.mxu0 0.0
    %1569 = vmatprep.mubr.f32.mxu0 0.0
    %1570 = vmatmul.mubr.f32.gmra.mrb[0].mxu0 %v1503
    %v1571 = vpop.f32.mrb[0].mxu0
    %v1572 = vadd.f32 %v1500, %v1571
    %v1573 = vpop.f32.mrb[0].mxu0
    %v1574 = vadd.f32 %v1500, %v1573
    %1575 = vdwg.mxu0
    %1576 = vmatprep.subr.mxu0 %v1491
    %1577 = vmatpush1.msra.mxu0 %v1490
    %1578 = vmatprep.subr.mxu0 0.0
    %1579 = vmatpush1.msra.mxu0 0.0
    %1580 = vmatprep.subr.mxu0 0.0
    %1581 = vmatpush1.msra.mxu0 0.0
    %1582 = vmatprep.subr.mxu0 0.0
    %1583 = vmatpush1.msra.mxu0 0.0
    %1584 = vmatprep.subr.mxu0 0.0
    %1585 = vmatpush1.msra.mxu0 0.0
    %1586 = vmatprep.subr.mxu0 0.0
    %1587 = vmatpush1.msra.mxu0 0.0
    %1588 = vmatprep.subr.mxu0 0.0
    %1589 = vmatpush1.msra.mxu0 0.0
    %1590 = vmatprep.subr.mxu0 0.0
    %1591 = vmatpush1.msra.mxu0 0.0
    %1592 = vmatprep.subr.mxu0 0.0
    %1593 = vmatpush1.msra.mxu0 0.0
    %1594 = vmatprep.subr.mxu0 0.0
    %1595 = vmatpush1.msra.mxu0 0.0
    %1596 = vmatprep.subr.mxu0 0.0
    %1597 = vmatpush1.msra.mxu0 0.0
    %1598 = vmatprep.subr.mxu0 0.0
    %1599 = vmatpush1.msra.mxu0 0.0
    %1600 = vmatprep.subr.mxu0 0.0
    %1601 = vmatpush1.msra.mxu0 0.0
    %1602 = vmatprep.subr.mxu0 0.0
    %1603 = vmatpush1.msra.mxu0 0.0
    %1604 = vmatprep.subr.mxu0 0.0
    %1605 = vmatpush1.msra.mxu0 0.0
    %1606 = vmatprep.subr.mxu0 0.0
    %1607 = vmatpush1.msra.mxu0 0.0
    %1608 = vmatprep.subr.mxu0 0.0
    %1609 = vmatpush1.msra.mxu0 0.0
    %1610 = vmatprep.subr.mxu0 0.0
    %1611 = vmatpush1.msra.mxu0 0.0
    %1612 = vmatprep.subr.mxu0 0.0
    %1613 = vmatpush1.msra.mxu0 0.0
    %1614 = vmatprep.subr.mxu0 0.0
    %1615 = vmatpush1.msra.mxu0 0.0
    %1616 = vmatprep.subr.mxu0 0.0
    %1617 = vmatpush1.msra.mxu0 0.0
    %1618 = vmatprep.subr.mxu0 0.0
    %1619 = vmatpush1.msra.mxu0 0.0
    %1620 = vmatprep.subr.mxu0 0.0
    %1621 = vmatpush1.msra.mxu0 0.0
    %1622 = vmatprep.subr.mxu0 0.0
    %1623 = vmatpush1.msra.mxu0 0.0
    %1624 = vmatprep.subr.mxu0 0.0
    %1625 = vmatpush1.msra.mxu0 0.0
    %1626 = vmatprep.subr.mxu0 0.0
    %1627 = vmatpush1.msra.mxu0 0.0
    %1628 = vmatprep.subr.mxu0 0.0
    %1629 = vmatpush1.msra.mxu0 0.0
    %1630 = vmatprep.subr.mxu0 0.0
    %1631 = vmatpush1.msra.mxu0 0.0
    %1632 = vmatprep.subr.mxu0 0.0
    %1633 = vmatpush1.msra.mxu0 0.0
    %1634 = vmatprep.subr.mxu0 0.0
    %1635 = vmatpush1.msra.mxu0 0.0
    %1636 = vmatprep.subr.mxu0 0.0
    %1637 = vmatpush1.msra.mxu0 0.0
    %1638 = vmatprep.subr.mxu0 0.0
    %1639 = vmatpush1.msra.mxu0 0.0
    %1640 = vmatprep.mubr.f32.mxu0 0.0
    %1641 = vmatmul.mubr.f32.gmra.mrb[0].mxu0 %v1503
    %v1642 = vpop.f32.mrb[0].mxu0
    %v1643 = vadd.f32 %v1500, %v1642
    %v1644 = vpop.f32.mrb[0].mxu0
    %v1645 = vadd.f32 %v1500, %v1644
    %1646 = vdwg.mxu0
    %1647 = vmatprep.subr.mxu0 %v1493
    %1648 = vmatpush1.msra.mxu0 %v1492
    %1649 = vmatprep.subr.mxu0 0.0
    %1650 = vmatpush1.msra.mxu0 0.0
    %1651 = vmatprep.subr.mxu0 0.0
    %1652 = vmatpush1.msra.mxu0 0.0
    %1653 = vmatprep.subr.mxu0 0.0
    %1654 = vmatpush1.msra.mxu0 0.0
    %1655 = vmatprep.subr.mxu0 0.0
    %1656 = vmatpush1.msra.mxu0 0.0
    %1657 = vmatprep.subr.mxu0 0.0
    %1658 = vmatpush1.msra.mxu0 0.0
    %1659 = vmatprep.subr.mxu0 0.0
    %1660 = vmatpush1.msra.mxu0 0.0
    %1661 = vmatprep.subr.mxu0 0.0
    %1662 = vmatpush1.msra.mxu0 0.0
    %1663 = vmatprep.subr.mxu0 0.0
    %1664 = vmatpush1.msra.mxu0 0.0
    %1665 = vmatprep.subr.mxu0 0.0
    %1666 = vmatpush1.msra.mxu0 0.0
    %1667 = vmatprep.subr.mxu0 0.0
    %1668 = vmatpush1.msra.mxu0 0.0
    %1669 = vmatprep.subr.mxu0 0.0
    %1670 = vmatpush1.msra.mxu0 0.0
    %1671 = vmatprep.subr.mxu0 0.0
    %1672 = vmatpush1.msra.mxu0 0.0
    %1673 = vmatprep.subr.mxu0 0.0
    %1674 = vmatpush1.msra.mxu0 0.0
    %1675 = vmatprep.subr.mxu0 0.0
    %1676 = vmatpush1.msra.mxu0 0.0
    %1677 = vmatprep.subr.mxu0 0.0
    %1678 = vmatpush1.msra.mxu0 0.0
    %1679 = vmatprep.subr.mxu0 0.0
    %1680 = vmatpush1.msra.mxu0 0.0
    %1681 = vmatprep.subr.mxu0 0.0
    %1682 = vmatpush1.msra.mxu0 0.0
    %1683 = vmatprep.subr.mxu0 0.0
    %1684 = vmatpush1.msra.mxu0 0.0
    %1685 = vmatprep.subr.mxu0 0.0
    %1686 = vmatpush1.msra.mxu0 0.0
    %1687 = vmatprep.subr.mxu0 0.0
    %1688 = vmatpush1.msra.mxu0 0.0
    %1689 = vmatprep.subr.mxu0 0.0
    %1690 = vmatpush1.msra.mxu0 0.0
    %1691 = vmatprep.subr.mxu0 0.0
    %1692 = vmatpush1.msra.mxu0 0.0
    %1693 = vmatprep.subr.mxu0 0.0
    %1694 = vmatpush1.msra.mxu0 0.0
    %1695 = vmatprep.subr.mxu0 0.0
    %1696 = vmatpush1.msra.mxu0 0.0
    %1697 = vmatprep.subr.mxu0 0.0
    %1698 = vmatpush1.msra.mxu0 0.0
    %1699 = vmatprep.subr.mxu0 0.0
    %1700 = vmatpush1.msra.mxu0 0.0
    %1701 = vmatprep.subr.mxu0 0.0
    %1702 = vmatpush1.msra.mxu0 0.0
    %1703 = vmatprep.subr.mxu0 0.0
    %1704 = vmatpush1.msra.mxu0 0.0
    %1705 = vmatprep.subr.mxu0 0.0
    %1706 = vmatpush1.msra.mxu0 0.0
    %1707 = vmatprep.subr.mxu0 0.0
    %1708 = vmatpush1.msra.mxu0 0.0
    %1709 = vmatprep.subr.mxu0 0.0
    %1710 = vmatpush1.msra.mxu0 0.0
    %1711 = vmatprep.mubr.f32.mxu0 0.0
    %1712 = vmatmul.mubr.f32.gmra.mrb[0].mxu0 %v1503
    %v1713 = vpop.f32.mrb[0].mxu0
    %v1714 = vadd.f32 %v1500, %v1713
    %v1715 = vpop.f32.mrb[0].mxu0
    %v1716 = vadd.f32 %v1500, %v1715
    %1717 = vdwg.mxu0
    %1718 = vmatprep.subr.mxu0 %v1495
    %1719 = vmatpush1.msra.mxu0 %v1494
    %1720 = vmatprep.subr.mxu0 0.0
    %1721 = vmatpush1.msra.mxu0 0.0
    %1722 = vmatprep.subr.mxu0 0.0
    %1723 = vmatpush1.msra.mxu0 0.0
    %1724 = vmatprep.subr.mxu0 0.0
    %1725 = vmatpush1.msra.mxu0 0.0
    %1726 = vmatprep.subr.mxu0 0.0
    %1727 = vmatpush1.msra.mxu0 0.0
    %1728 = vmatprep.subr.mxu0 0.0
    %1729 = vmatpush1.msra.mxu0 0.0
    %1730 = vmatprep.subr.mxu0 0.0
    %1731 = vmatpush1.msra.mxu0 0.0
    %1732 = vmatprep.subr.mxu0 0.0
    %1733 = vmatpush1.msra.mxu0 0.0
    %1734 = vmatprep.subr.mxu0 0.0
    %1735 = vmatpush1.msra.mxu0 0.0
    %1736 = vmatprep.subr.mxu0 0.0
    %1737 = vmatpush1.msra.mxu0 0.0
    %1738 = vmatprep.subr.mxu0 0.0
    %1739 = vmatpush1.msra.mxu0 0.0
    %1740 = vmatprep.subr.mxu0 0.0
    %1741 = vmatpush1.msra.mxu0 0.0
    %1742 = vmatprep.subr.mxu0 0.0
    %1743 = vmatpush1.msra.mxu0 0.0
    %1744 = vmatprep.subr.mxu0 0.0
    %1745 = vmatpush1.msra.mxu0 0.0
    %1746 = vmatprep.subr.mxu0 0.0
    %1747 = vmatpush1.msra.mxu0 0.0
    %1748 = vmatprep.subr.mxu0 0.0
    %1749 = vmatpush1.msra.mxu0 0.0
    %1750 = vmatprep.subr.mxu0 0.0
    %1751 = vmatpush1.msra.mxu0 0.0
    %1752 = vmatprep.subr.mxu0 0.0
    %1753 = vmatpush1.msra.mxu0 0.0
    %1754 = vmatprep.subr.mxu0 0.0
    %1755 = vmatpush1.msra.mxu0 0.0
    %1756 = vmatprep.subr.mxu0 0.0
    %1757 = vmatpush1.msra.mxu0 0.0
    %1758 = vmatprep.subr.mxu0 0.0
    %1759 = vmatpush1.msra.mxu0 0.0
    %1760 = vmatprep.subr.mxu0 0.0
    %1761 = vmatpush1.msra.mxu0 0.0
    %1762 = vmatprep.subr.mxu0 0.0
    %1763 = vmatpush1.msra.mxu0 0.0
    %1764 = vmatprep.subr.mxu0 0.0
    %1765 = vmatpush1.msra.mxu0 0.0
    %1766 = vmatprep.subr.mxu0 0.0
    %1767 = vmatpush1.msra.mxu0 0.0
    %1768 = vmatprep.subr.mxu0 0.0
    %1769 = vmatpush1.msra.mxu0 0.0
    %1770 = vmatprep.subr.mxu0 0.0
    %1771 = vmatpush1.msra.mxu0 0.0
    %1772 = vmatprep.subr.mxu0 0.0
    %1773 = vmatpush1.msra.mxu0 0.0
    %1774 = vmatprep.subr.mxu0 0.0
    %1775 = vmatpush1.msra.mxu0 0.0
    %1776 = vmatprep.subr.mxu0 0.0
    %1777 = vmatpush1.msra.mxu0 0.0
    %1778 = vmatprep.subr.mxu0 0.0
    %1779 = vmatpush1.msra.mxu0 0.0
    %1780 = vmatprep.subr.mxu0 0.0
    %1781 = vmatpush1.msra.mxu0 0.0
    %1782 = vmatprep.mubr.f32.mxu0 0.0
    %1783 = vmatmul.mubr.f32.gmra.mrb[0].mxu0 %v1503
    %v1784 = vpop.f32.mrb[0].mxu0
    %v1785 = vadd.f32 %v1500, %v1784
    %v1786 = vpop.f32.mrb[0].mxu0
    %v1787 = vadd.f32 %v1500, %v1786
    %1788 = vdwg.mxu0
    %v1789 = vxor.u32 %v1572, 2147483648
    %v1790 = vxor.u32 %v1574, 2147483648
    %v1791 = vxor.u32 %v1643, 2147483648
    %v1792 = vxor.u32 %v1645, 2147483648
    %v1793 = vxor.u32 %v1714, 2147483648
    %v1794 = vxor.u32 %v1716, 2147483648
    %v1795 = vxor.u32 %v1785, 2147483648
    %v1796 = vxor.u32 %v1787, 2147483648
    %v1797 = vmul.f32 %v1789, 1.442695
    %v1798 = vpow.pop %v1797
    %v1799 = vmul.f32 %v1790, 1.442695
    %v1800 = vpow.pop %v1799
    %v1801 = vmul.f32 %v1791, 1.442695
    %v1802 = vpow.pop %v1801
    %v1803 = vmul.f32 %v1792, 1.442695
    %v1804 = vpow.pop %v1803
    %v1805 = vmul.f32 %v1793, 1.442695
    %v1806 = vpow.pop %v1805
    %v1807 = vmul.f32 %v1794, 1.442695
    %v1808 = vpow.pop %v1807
    %v1809 = vmul.f32 %v1795, 1.442695
    %v1810 = vpow.pop %v1809
    %v1811 = vmul.f32 %v1796, 1.442695
    %v1812 = vpow.pop %v1811
    %v1813 = vadd.f32 %v1798, 1.0
    %v1814 = vadd.f32 %v1800, 1.0
    %v1815 = vadd.f32 %v1802, 1.0
    %v1816 = vadd.f32 %v1804, 1.0
    %v1817 = vadd.f32 %v1806, 1.0
    %v1818 = vadd.f32 %v1808, 1.0
    %v1819 = vadd.f32 %v1810, 1.0
    %v1820 = vadd.f32 %v1812, 1.0
    %v1821 = vrcp.pop %v1813
    %v1822 = vmul.f32 1.0, %v1821
    %v1823 = vrcp.pop %v1814
    %v1824 = vmul.f32 1.0, %v1823
    %v1825 = vrcp.pop %v1815
    %v1826 = vmul.f32 1.0, %v1825
    %v1827 = vrcp.pop %v1816
    %v1828 = vmul.f32 1.0, %v1827
    %v1829 = vrcp.pop %v1817
    %v1830 = vmul.f32 1.0, %v1829
    %v1831 = vrcp.pop %v1818
    %v1832 = vmul.f32 1.0, %v1831
    %v1833 = vrcp.pop %v1819
    %v1834 = vmul.f32 1.0, %v1833
    %v1835 = vrcp.pop %v1820
    %v1836 = vmul.f32 1.0, %v1835
    %1837 = vst [vmem:[#allocation3] sm:$0xff] %v1822
    %s1838 = scalar_lea.vmem [#allocation3], 8
    %1839 = vst [vmem:[%s1838] sm:$0xff] %v1824
    %s1840 = scalar_lea.vmem [#allocation3], 16
    %1841 = vst [vmem:[%s1840] sm:$0xff] %v1826
    %s1842 = scalar_lea.vmem [#allocation3], 24
    %1843 = vst [vmem:[%s1842] sm:$0xff] %v1828
    %s1844 = scalar_lea.vmem [#allocation3], 32
    %1845 = vst [vmem:[%s1844] sm:$0xff] %v1830
    %s1846 = scalar_lea.vmem [#allocation3], 40
    %1847 = vst [vmem:[%s1846] sm:$0xff] %v1832
    %s1848 = scalar_lea.vmem [#allocation3], 48
    %1849 = vst [vmem:[%s1848] sm:$0xff] %v1834
    %s1850 = scalar_lea.vmem [#allocation3], 56
    %1851 = vst [vmem:[%s1850] sm:$0xff] %v1836
    // Predicated region
    $region30: #{tpu_custom_call.1} parent=1 // pred_check
      _
    $region31: #{tpu_custom_call.1} parent=1 // pred_check_branch
      %1853 = sbr.rel (0) target = $region33
    $region32: #{tpu_custom_call.1} parent=1 // pred_region
      %s1855 = ssub.s32 1024, 1024
      %1856 = vsyncadd [#allocation4], %s1855
      %s1857 = sshll.u32 [#allocation3], 4
      %s1858 = int_to_ptr.vmem [resolvable:$true] %s1857
      %1863 = dma.vmem_to_hbm [thread:$0]  %s1858, 1024, %s7, [#allocation4], 128, 128, 8
    $region33: #{tpu_custom_call.1} parent=1 // pred_fallthru
      _
    // Predicated region
    $region34: #{tpu_custom_call.1} parent=1 // pred_check
      _
    $region35: #{tpu_custom_call.1} parent=1 // pred_check_branch
      %1865 = sbr.rel (0) target = $region37
    $region36: #{tpu_custom_call.1} parent=1 // pred_region
      %1866 = dma.done [#allocation4], 1024
    $region37: #{tpu_custom_call.1} parent=1 // pred_fallthru
      _
    %1867 = vsyncpa [#allocation4], 1

</llo_original>
